<compile_context>
chip_gen: v5e
topology: v5e:2x2
jax: 0.10.0
libtpu: 0.0.40
codegen_flags: <defaults>
</compile_context>

<pallas_src>
import functools

import jax
import jax.numpy as jnp
from jax.experimental import pallas as pl
from jax.experimental.pallas import tpu as pltpu

# Perf knob (per review): set to jnp.bfloat16 on v6e/v7x to feed the MXU its
# native operand dtype (accumulation / state / elementwise stay float32).
# Default float32 keeps exact parity with the PyTorch fp32 forward.
MATMUL_DTYPE = jnp.float32


# ----------------------------------------------------------------------------
# Single fused kernel
# ----------------------------------------------------------------------------
def _fused_kernel(B, T, H, mm_dtype,
                  ids_ref, tags_ref, table_ref,
                  wih_f_ref, whh_f_ref, b_f_ref,
                  wih_b_ref, whh_b_ref, b_b_ref,
                  wc_ref, bc_ref,
                  logits_ref, pre_ref, loss_ref):
    N = B * T
    V = table_ref.shape[0]
    C = wc_ref.shape[1]
    f32 = jnp.float32

    def mm(a, b):
        return jnp.dot(a.astype(mm_dtype), b.astype(mm_dtype),
                       preferred_element_type=f32)

    # 1) Embedding gather: one-hot x table.  Table (V,E) is VMEM-resident; a
    #    single MXU contraction replaces B*T tiny row DMAs.
    ids = ids_ref[...]                                                  # (N,1) i32, time-major
    onehot = (jax.lax.broadcasted_iota(jnp.int32, (N, V), 1) == ids)
    emb = mm(onehot.astype(f32), table_ref[...])                        # (N,E)

    # 2) Input projections for both directions, hoisted out of the time loop
    #    (one batched matmul per direction; bias added once here).
    xg_f = mm(emb, wih_f_ref[...]) + b_f_ref[...]                       # (N,4H)
    xg_b = mm(emb, wih_b_ref[...]) + b_b_ref[...]                       # (N,4H)

    whh_f = whh_f_ref[...]                                              # (H,4H) hoisted loads
    whh_b = whh_b_ref[...]

    def cell(xg_t, h, c, whh):
        # Gate order follows PyTorch: i, f, g, o.
        g = xg_t + mm(h, whh)                                           # (B,4H)
        i = jax.nn.sigmoid(g[:, 0 * H:1 * H])
        f = jax.nn.sigmoid(g[:, 1 * H:2 * H])
        gg = jnp.tanh(g[:, 2 * H:3 * H])
        o = jax.nn.sigmoid(g[:, 3 * H:4 * H])
        c_new = f * c + i * gg
        h_new = o * jnp.tanh(c_new)
        return h_new, c_new

    zeros = jnp.zeros((B, H), f32)
    h_f, c_f, h_b, c_b = zeros, zeros, zeros, zeros
    out_f = [None] * T
    out_b = [None] * T
    # Fully unrolled time loop: static indices, everything stays in vregs/VMEM.
    for s in range(T):
        # forward direction consumes timestep s
        h_f, c_f = cell(xg_f[s * B:(s + 1) * B, :], h_f, c_f, whh_f)
        out_f[s] = h_f
        # backward direction consumes timestep T-1-s; its output belongs there
        tb = T - 1 - s
        h_b, c_b = cell(xg_b[tb * B:(tb + 1) * B, :], h_b, c_b, whh_b)
        out_b[tb] = h_b

    feats = jnp.concatenate([jnp.concatenate(out_f, axis=0),
                             jnp.concatenate(out_b, axis=0)], axis=1)   # (N,2H) = [fwd|bwd]

    # 3) Classifier (single matmul on VMEM-resident feats).
    logits = mm(feats, wc_ref[...]) + bc_ref[...]                       # (N,C)
    logits_ref[...] = logits

    # 4) argmax (first-occurrence, matches torch.argmax), fused — no HBM
    #    round-trip of the lane-sparse logits.
    col = jax.lax.broadcasted_iota(jnp.int32, (N, C), 1)
    mx = jnp.max(logits, axis=-1, keepdims=True)
    pre_ref[...] = jnp.min(jnp.where(logits == mx, col, C),
                           axis=-1, keepdims=True)

    # 5) Mean cross-entropy over all N tokens (no ignore_index, like the
    #    default nn.CrossEntropyLoss in the reference model).
    tags = tags_ref[...]                                                # (N,1) i32
    lse = jnp.log(jnp.sum(jnp.exp(logits - mx), axis=-1, keepdims=True)) + mx
    picked = jnp.sum(jnp.where(col == tags, logits, 0.0),
                     axis=-1, keepdims=True)
    loss_ref[0, 0] = jnp.sum(lse - picked) / N


def _fused_call(ids_tm, tags_tm, params, B, T):
    table = params["embedding"]
    V, E = table.shape
    H = params["whh_f"].shape[0]
    G = 4 * H
    C = params["w_cls"].shape[1]
    N = B * T

    def full(shape):
        return pl.BlockSpec(shape, lambda: tuple(0 for _ in shape))

    kernel = functools.partial(_fused_kernel, B, T, H, MATMUL_DTYPE)

    return pl.pallas_call(
        kernel,
        out_shape=(jax.ShapeDtypeStruct((N, C), jnp.float32),   # logits (time-major)
                   jax.ShapeDtypeStruct((N, 1), jnp.int32),     # argmax (time-major)
                   jax.ShapeDtypeStruct((1, 1), jnp.float32)),  # mean CE loss
        in_specs=[full((N, 1)), full((N, 1)), full((V, E)),
                  full((E, G)), full((H, G)), full((1, G)),
                  full((E, G)), full((H, G)), full((1, G)),
                  full((2 * H, C)), full((1, C))],
        out_specs=(full((N, C)), full((N, 1)),
                   pl.BlockSpec(memory_space=pltpu.SMEM)),
    )(ids_tm, tags_tm, table,
      params["wih_f"], params["whh_f"], params["b_f"],
      params["wih_b"], params["whh_b"], params["b_b"],
      params["w_cls"], params["b_cls"])


# ----------------------------------------------------------------------------
# Model wrapper
# ----------------------------------------------------------------------------
def init_params(key, corpus_num, embedding_num, hidden_num, class_num):
    ks = jax.random.split(key, 10)
    s = 0.1
    H, E, C = hidden_num, embedding_num, class_num
    # NOTE: b_f / b_b are the combined LSTM biases (b_ih + b_hh per direction).
    return {
        "embedding": s * jax.random.normal(ks[0], (corpus_num, E), jnp.float32),
        "wih_f": s * jax.random.normal(ks[1], (E, 4 * H), jnp.float32),
        "whh_f": s * jax.random.normal(ks[2], (H, 4 * H), jnp.float32),
        "b_f":   s * jax.random.normal(ks[3], (1, 4 * H), jnp.float32),
        "wih_b": s * jax.random.normal(ks[4], (E, 4 * H), jnp.float32),
        "whh_b": s * jax.random.normal(ks[5], (H, 4 * H), jnp.float32),
        "b_b":   s * jax.random.normal(ks[6], (1, 4 * H), jnp.float32),
        "w_cls": s * jax.random.normal(ks[7], (2 * H, C), jnp.float32),
        "b_cls": s * jax.random.normal(ks[8], (1, C), jnp.float32),
    }


def mymodel_forward(params, batch_data, batch_tag=None):
    B, T = batch_data.shape
    C = params["w_cls"].shape[1]

    # Time-major flatten of the tiny int id/tag tensors so each LSTM step sees
    # a contiguous (B, ...) row block inside the kernel.
    ids_tm = batch_data.astype(jnp.int32).T.reshape(T * B, 1)
    if batch_tag is not None:
        tags_tm = batch_tag.astype(jnp.int32).T.reshape(T * B, 1)
    else:
        tags_tm = jnp.zeros((T * B, 1), jnp.int32)

    logits_tm, pre_tm, loss = _fused_call(ids_tm, tags_tm, params, B, T)

    # Back to PyTorch's batch-major layout (tiny output-side transposes).
    logits = logits_tm.reshape(T, B, C).transpose(1, 0, 2)     # (B, T, C)
    pre = pre_tm.reshape(T, B).T.reshape(-1)                   # == self.pre ordering
    loss_out = loss[0, 0] if batch_tag is not None else None
    return loss_out, pre, logits


if __name__ == "__main__":
    corpus_num, embedding_num, hidden_num, class_num = 100, 32, 32, 5
    B, T = 2, 8

    key = jax.random.PRNGKey(0)
    k_param, k_data, k_tag = jax.random.split(key, 3)

    params = init_params(k_param, corpus_num, embedding_num, hidden_num, class_num)
    batch_data = jax.random.randint(k_data, (B, T), 0, corpus_num, dtype=jnp.int32)
    batch_tag = jax.random.randint(k_tag, (B, T), 0, class_num, dtype=jnp.int32)

    loss, pre, logits = mymodel_forward(params, batch_data, batch_tag)
    jax.block_until_ready((loss, pre, logits))

    assert logits.shape == (B, T, class_num)
    assert pre.shape == (B * T,)
    assert bool(jnp.isfinite(loss))
    # TODO(synk): on v7x the fwd/bwd directions could be split across the two
    # TensorCores via core_map; at these toy sizes a single fused call wins.
    print("KERNEL_OK")
</pallas_src>

<mosaic_0001>
module attributes {stable_mosaic.version = 11 : i64} {
  func.func @_fused_kernel(%arg0: memref<16x1xi32, #tpu.memory_space<vmem>>, %arg1: memref<16x1xi32, #tpu.memory_space<vmem>>, %arg2: memref<100x32xf32, #tpu.memory_space<vmem>>, %arg3: memref<32x128xf32, #tpu.memory_space<vmem>>, %arg4: memref<32x128xf32, #tpu.memory_space<vmem>>, %arg5: memref<1x128xf32, #tpu.memory_space<vmem>>, %arg6: memref<32x128xf32, #tpu.memory_space<vmem>>, %arg7: memref<32x128xf32, #tpu.memory_space<vmem>>, %arg8: memref<1x128xf32, #tpu.memory_space<vmem>>, %arg9: memref<64x5xf32, #tpu.memory_space<vmem>>, %arg10: memref<1x5xf32, #tpu.memory_space<vmem>>, %arg11: memref<16x5xf32, #tpu.memory_space<vmem>>, %arg12: memref<16x1xi32, #tpu.memory_space<vmem>>, %arg13: memref<1x1xf32, #tpu.memory_space<smem>>) attributes {dimension_semantics = [], scalar_prefetch = 0 : i64, scratch_operands = 0 : i64, tpu.core_type = #tpu.core_type<tc>} {
    %c0 = arith.constant 0 : index
    %c0_0 = arith.constant 0 : index
    %0 = vector.load %arg0[%c0, %c0_0] : memref<16x1xi32, #tpu.memory_space<vmem>>, vector<16x1xi32>
    %1 = tpu.iota {dimensions = array<i32: 1>} : vector<16x100xi32>
    %2 = vector.broadcast %0 : vector<16x1xi32> to vector<16x100xi32>
    %3 = arith.cmpi eq, %1, %2 : vector<16x100xi32>
    %4 = arith.extui %3 : vector<16x100xi1> to vector<16x100xi32>
    %5 = arith.sitofp %4 : vector<16x100xi32> to vector<16x100xf32>
    %c0_1 = arith.constant 0 : index
    %c0_2 = arith.constant 0 : index
    %6 = vector.load %arg2[%c0_1, %c0_2] : memref<100x32xf32, #tpu.memory_space<vmem>>, vector<100x32xf32>
    %cst = arith.constant dense<0.000000e+00> : vector<16x32xf32>
    %7 = tpu.matmul %5, %6, %cst {dimension_numbers = #tpu.dot_dimension_numbers<[1], [0], [0], [1], [0, 0, 1, 1], [], []>} : vector<16x100xf32>, vector<100x32xf32>, vector<16x32xf32> -> vector<16x32xf32>
    %c0_3 = arith.constant 0 : index
    %c0_4 = arith.constant 0 : index
    %8 = vector.load %arg3[%c0_3, %c0_4] : memref<32x128xf32, #tpu.memory_space<vmem>>, vector<32x128xf32>
    %cst_5 = arith.constant dense<0.000000e+00> : vector<16x128xf32>
    %9 = tpu.matmul %7, %8, %cst_5 {dimension_numbers = #tpu.dot_dimension_numbers<[1], [0], [0], [1], [0, 0, 1, 1], [], []>} : vector<16x32xf32>, vector<32x128xf32>, vector<16x128xf32> -> vector<16x128xf32>
    %c0_6 = arith.constant 0 : index
    %c0_7 = arith.constant 0 : index
    %10 = vector.load %arg5[%c0_6, %c0_7] : memref<1x128xf32, #tpu.memory_space<vmem>>, vector<1x128xf32>
    %11 = vector.broadcast %10 : vector<1x128xf32> to vector<16x128xf32>
    %12 = arith.addf %9, %11 : vector<16x128xf32>
    %c0_8 = arith.constant 0 : index
    %c0_9 = arith.constant 0 : index
    %13 = vector.load %arg6[%c0_8, %c0_9] : memref<32x128xf32, #tpu.memory_space<vmem>>, vector<32x128xf32>
    %cst_10 = arith.constant dense<0.000000e+00> : vector<16x128xf32>
    %14 = tpu.matmul %7, %13, %cst_10 {dimension_numbers = #tpu.dot_dimension_numbers<[1], [0], [0], [1], [0, 0, 1, 1], [], []>} : vector<16x32xf32>, vector<32x128xf32>, vector<16x128xf32> -> vector<16x128xf32>
    %c0_11 = arith.constant 0 : index
    %c0_12 = arith.constant 0 : index
    %15 = vector.load %arg8[%c0_11, %c0_12] : memref<1x128xf32, #tpu.memory_space<vmem>>, vector<1x128xf32>
    %16 = vector.broadcast %15 : vector<1x128xf32> to vector<16x128xf32>
    %17 = arith.addf %14, %16 : vector<16x128xf32>
    %c0_13 = arith.constant 0 : index
    %c0_14 = arith.constant 0 : index
    %18 = vector.load %arg4[%c0_13, %c0_14] : memref<32x128xf32, #tpu.memory_space<vmem>>, vector<32x128xf32>
    %c0_15 = arith.constant 0 : index
    %c0_16 = arith.constant 0 : index
    %19 = vector.load %arg7[%c0_15, %c0_16] : memref<32x128xf32, #tpu.memory_space<vmem>>, vector<32x128xf32>
    %cst_17 = arith.constant 0.000000e+00 : f32
    %20 = vector.broadcast %cst_17 : f32 to vector<2x32xf32>
    %21 = vector.extract_strided_slice %12 {offsets = [0, 0], sizes = [2, 128], strides = [1, 1]} : vector<16x128xf32> to vector<2x128xf32>
    %cst_18 = arith.constant dense<0.000000e+00> : vector<2x128xf32>
    %22 = tpu.matmul %20, %18, %cst_18 {dimension_numbers = #tpu.dot_dimension_numbers<[1], [0], [0], [1], [0, 0, 1, 1], [], []>} : vector<2x32xf32>, vector<32x128xf32>, vector<2x128xf32> -> vector<2x128xf32>
    %23 = arith.addf %21, %22 : vector<2x128xf32>
    %24 = vector.extract_strided_slice %23 {offsets = [0, 0], sizes = [2, 32], strides = [1, 1]} : vector<2x128xf32> to vector<2x32xf32>
    %25 = arith.negf %24 : vector<2x32xf32>
    %26 = math.exp %25 : vector<2x32xf32>
    %cst_19 = arith.constant 1.000000e+00 : f32
    %27 = vector.broadcast %cst_19 : f32 to vector<2x32xf32>
    %28 = arith.addf %27, %26 : vector<2x32xf32>
    %29 = arith.divf %27, %28 : vector<2x32xf32>
    %30 = vector.extract_strided_slice %23 {offsets = [0, 32], sizes = [2, 32], strides = [1, 1]} : vector<2x128xf32> to vector<2x32xf32>
    %31 = arith.negf %30 : vector<2x32xf32>
    %32 = math.exp %31 : vector<2x32xf32>
    %cst_20 = arith.constant 1.000000e+00 : f32
    %33 = vector.broadcast %cst_20 : f32 to vector<2x32xf32>
    %34 = arith.addf %33, %32 : vector<2x32xf32>
    %35 = arith.divf %33, %34 : vector<2x32xf32>
    %36 = vector.extract_strided_slice %23 {offsets = [0, 64], sizes = [2, 32], strides = [1, 1]} : vector<2x128xf32> to vector<2x32xf32>
    %37 = math.tanh %36 : vector<2x32xf32>
    %38 = vector.extract_strided_slice %23 {offsets = [0, 96], sizes = [2, 32], strides = [1, 1]} : vector<2x128xf32> to vector<2x32xf32>
    %39 = arith.negf %38 : vector<2x32xf32>
    %40 = math.exp %39 : vector<2x32xf32>
    %cst_21 = arith.constant 1.000000e+00 : f32
    %41 = vector.broadcast %cst_21 : f32 to vector<2x32xf32>
    %42 = arith.addf %41, %40 : vector<2x32xf32>
    %43 = arith.divf %41, %42 : vector<2x32xf32>
    %44 = arith.mulf %35, %20 : vector<2x32xf32>
    %45 = arith.mulf %29, %37 : vector<2x32xf32>
    %46 = arith.addf %44, %45 : vector<2x32xf32>
    %47 = math.tanh %46 : vector<2x32xf32>
    %48 = arith.mulf %43, %47 : vector<2x32xf32>
    %49 = vector.extract_strided_slice %17 {offsets = [14, 0], sizes = [2, 128], strides = [1, 1]} : vector<16x128xf32> to vector<2x128xf32>
    %cst_22 = arith.constant dense<0.000000e+00> : vector<2x128xf32>
    %50 = tpu.matmul %20, %19, %cst_22 {dimension_numbers = #tpu.dot_dimension_numbers<[1], [0], [0], [1], [0, 0, 1, 1], [], []>} : vector<2x32xf32>, vector<32x128xf32>, vector<2x128xf32> -> vector<2x128xf32>
    %51 = arith.addf %49, %50 : vector<2x128xf32>
    %52 = vector.extract_strided_slice %51 {offsets = [0, 0], sizes = [2, 32], strides = [1, 1]} : vector<2x128xf32> to vector<2x32xf32>
    %53 = arith.negf %52 : vector<2x32xf32>
    %54 = math.exp %53 : vector<2x32xf32>
    %cst_23 = arith.constant 1.000000e+00 : f32
    %55 = vector.broadcast %cst_23 : f32 to vector<2x32xf32>
    %56 = arith.addf %55, %54 : vector<2x32xf32>
    %57 = arith.divf %55, %56 : vector<2x32xf32>
    %58 = vector.extract_strided_slice %51 {offsets = [0, 32], sizes = [2, 32], strides = [1, 1]} : vector<2x128xf32> to vector<2x32xf32>
    %59 = arith.negf %58 : vector<2x32xf32>
    %60 = math.exp %59 : vector<2x32xf32>
    %cst_24 = arith.constant 1.000000e+00 : f32
    %61 = vector.broadcast %cst_24 : f32 to vector<2x32xf32>
    %62 = arith.addf %61, %60 : vector<2x32xf32>
    %63 = arith.divf %61, %62 : vector<2x32xf32>
    %64 = vector.extract_strided_slice %51 {offsets = [0, 64], sizes = [2, 32], strides = [1, 1]} : vector<2x128xf32> to vector<2x32xf32>
    %65 = math.tanh %64 : vector<2x32xf32>
    %66 = vector.extract_strided_slice %51 {offsets = [0, 96], sizes = [2, 32], strides = [1, 1]} : vector<2x128xf32> to vector<2x32xf32>
    %67 = arith.negf %66 : vector<2x32xf32>
    %68 = math.exp %67 : vector<2x32xf32>
    %cst_25 = arith.constant 1.000000e+00 : f32
    %69 = vector.broadcast %cst_25 : f32 to vector<2x32xf32>
    %70 = arith.addf %69, %68 : vector<2x32xf32>
    %71 = arith.divf %69, %70 : vector<2x32xf32>
    %72 = arith.mulf %63, %20 : vector<2x32xf32>
    %73 = arith.mulf %57, %65 : vector<2x32xf32>
    %74 = arith.addf %72, %73 : vector<2x32xf32>
    %75 = math.tanh %74 : vector<2x32xf32>
    %76 = arith.mulf %71, %75 : vector<2x32xf32>
    %77 = vector.extract_strided_slice %12 {offsets = [2, 0], sizes = [2, 128], strides = [1, 1]} : vector<16x128xf32> to vector<2x128xf32>
    %cst_26 = arith.constant dense<0.000000e+00> : vector<2x128xf32>
    %78 = tpu.matmul %48, %18, %cst_26 {dimension_numbers = #tpu.dot_dimension_numbers<[1], [0], [0], [1], [0, 0, 1, 1], [], []>} : vector<2x32xf32>, vector<32x128xf32>, vector<2x128xf32> -> vector<2x128xf32>
    %79 = arith.addf %77, %78 : vector<2x128xf32>
    %80 = vector.extract_strided_slice %79 {offsets = [0, 0], sizes = [2, 32], strides = [1, 1]} : vector<2x128xf32> to vector<2x32xf32>
    %81 = arith.negf %80 : vector<2x32xf32>
    %82 = math.exp %81 : vector<2x32xf32>
    %cst_27 = arith.constant 1.000000e+00 : f32
    %83 = vector.broadcast %cst_27 : f32 to vector<2x32xf32>
    %84 = arith.addf %83, %82 : vector<2x32xf32>
    %85 = arith.divf %83, %84 : vector<2x32xf32>
    %86 = vector.extract_strided_slice %79 {offsets = [0, 32], sizes = [2, 32], strides = [1, 1]} : vector<2x128xf32> to vector<2x32xf32>
    %87 = arith.negf %86 : vector<2x32xf32>
    %88 = math.exp %87 : vector<2x32xf32>
    %cst_28 = arith.constant 1.000000e+00 : f32
    %89 = vector.broadcast %cst_28 : f32 to vector<2x32xf32>
    %90 = arith.addf %89, %88 : vector<2x32xf32>
    %91 = arith.divf %89, %90 : vector<2x32xf32>
    %92 = vector.extract_strided_slice %79 {offsets = [0, 64], sizes = [2, 32], strides = [1, 1]} : vector<2x128xf32> to vector<2x32xf32>
    %93 = math.tanh %92 : vector<2x32xf32>
    %94 = vector.extract_strided_slice %79 {offsets = [0, 96], sizes = [2, 32], strides = [1, 1]} : vector<2x128xf32> to vector<2x32xf32>
    %95 = arith.negf %94 : vector<2x32xf32>
    %96 = math.exp %95 : vector<2x32xf32>
    %cst_29 = arith.constant 1.000000e+00 : f32
    %97 = vector.broadcast %cst_29 : f32 to vector<2x32xf32>
    %98 = arith.addf %97, %96 : vector<2x32xf32>
    %99 = arith.divf %97, %98 : vector<2x32xf32>
    %100 = arith.mulf %91, %46 : vector<2x32xf32>
    %101 = arith.mulf %85, %93 : vector<2x32xf32>
    %102 = arith.addf %100, %101 : vector<2x32xf32>
    %103 = math.tanh %102 : vector<2x32xf32>
    %104 = arith.mulf %99, %103 : vector<2x32xf32>
    %105 = vector.extract_strided_slice %17 {offsets = [12, 0], sizes = [2, 128], strides = [1, 1]} : vector<16x128xf32> to vector<2x128xf32>
    %cst_30 = arith.constant dense<0.000000e+00> : vector<2x128xf32>
    %106 = tpu.matmul %76, %19, %cst_30 {dimension_numbers = #tpu.dot_dimension_numbers<[1], [0], [0], [1], [0, 0, 1, 1], [], []>} : vector<2x32xf32>, vector<32x128xf32>, vector<2x128xf32> -> vector<2x128xf32>
    %107 = arith.addf %105, %106 : vector<2x128xf32>
    %108 = vector.extract_strided_slice %107 {offsets = [0, 0], sizes = [2, 32], strides = [1, 1]} : vector<2x128xf32> to vector<2x32xf32>
    %109 = arith.negf %108 : vector<2x32xf32>
    %110 = math.exp %109 : vector<2x32xf32>
    %cst_31 = arith.constant 1.000000e+00 : f32
    %111 = vector.broadcast %cst_31 : f32 to vector<2x32xf32>
    %112 = arith.addf %111, %110 : vector<2x32xf32>
    %113 = arith.divf %111, %112 : vector<2x32xf32>
    %114 = vector.extract_strided_slice %107 {offsets = [0, 32], sizes = [2, 32], strides = [1, 1]} : vector<2x128xf32> to vector<2x32xf32>
    %115 = arith.negf %114 : vector<2x32xf32>
    %116 = math.exp %115 : vector<2x32xf32>
    %cst_32 = arith.constant 1.000000e+00 : f32
    %117 = vector.broadcast %cst_32 : f32 to vector<2x32xf32>
    %118 = arith.addf %117, %116 : vector<2x32xf32>
    %119 = arith.divf %117, %118 : vector<2x32xf32>
    %120 = vector.extract_strided_slice %107 {offsets = [0, 64], sizes = [2, 32], strides = [1, 1]} : vector<2x128xf32> to vector<2x32xf32>
    %121 = math.tanh %120 : vector<2x32xf32>
    %122 = vector.extract_strided_slice %107 {offsets = [0, 96], sizes = [2, 32], strides = [1, 1]} : vector<2x128xf32> to vector<2x32xf32>
    %123 = arith.negf %122 : vector<2x32xf32>
    %124 = math.exp %123 : vector<2x32xf32>
    %cst_33 = arith.constant 1.000000e+00 : f32
    %125 = vector.broadcast %cst_33 : f32 to vector<2x32xf32>
    %126 = arith.addf %125, %124 : vector<2x32xf32>
    %127 = arith.divf %125, %126 : vector<2x32xf32>
    %128 = arith.mulf %119, %74 : vector<2x32xf32>
    %129 = arith.mulf %113, %121 : vector<2x32xf32>
    %130 = arith.addf %128, %129 : vector<2x32xf32>
    %131 = math.tanh %130 : vector<2x32xf32>
    %132 = arith.mulf %127, %131 : vector<2x32xf32>
    %133 = vector.extract_strided_slice %12 {offsets = [4, 0], sizes = [2, 128], strides = [1, 1]} : vector<16x128xf32> to vector<2x128xf32>
    %cst_34 = arith.constant dense<0.000000e+00> : vector<2x128xf32>
    %134 = tpu.matmul %104, %18, %cst_34 {dimension_numbers = #tpu.dot_dimension_numbers<[1], [0], [0], [1], [0, 0, 1, 1], [], []>} : vector<2x32xf32>, vector<32x128xf32>, vector<2x128xf32> -> vector<2x128xf32>
    %135 = arith.addf %133, %134 : vector<2x128xf32>
    %136 = vector.extract_strided_slice %135 {offsets = [0, 0], sizes = [2, 32], strides = [1, 1]} : vector<2x128xf32> to vector<2x32xf32>
    %137 = arith.negf %136 : vector<2x32xf32>
    %138 = math.exp %137 : vector<2x32xf32>
    %cst_35 = arith.constant 1.000000e+00 : f32
    %139 = vector.broadcast %cst_35 : f32 to vector<2x32xf32>
    %140 = arith.addf %139, %138 : vector<2x32xf32>
    %141 = arith.divf %139, %140 : vector<2x32xf32>
    %142 = vector.extract_strided_slice %135 {offsets = [0, 32], sizes = [2, 32], strides = [1, 1]} : vector<2x128xf32> to vector<2x32xf32>
    %143 = arith.negf %142 : vector<2x32xf32>
    %144 = math.exp %143 : vector<2x32xf32>
    %cst_36 = arith.constant 1.000000e+00 : f32
    %145 = vector.broadcast %cst_36 : f32 to vector<2x32xf32>
    %146 = arith.addf %145, %144 : vector<2x32xf32>
    %147 = arith.divf %145, %146 : vector<2x32xf32>
    %148 = vector.extract_strided_slice %135 {offsets = [0, 64], sizes = [2, 32], strides = [1, 1]} : vector<2x128xf32> to vector<2x32xf32>
    %149 = math.tanh %148 : vector<2x32xf32>
    %150 = vector.extract_strided_slice %135 {offsets = [0, 96], sizes = [2, 32], strides = [1, 1]} : vector<2x128xf32> to vector<2x32xf32>
    %151 = arith.negf %150 : vector<2x32xf32>
    %152 = math.exp %151 : vector<2x32xf32>
    %cst_37 = arith.constant 1.000000e+00 : f32
    %153 = vector.broadcast %cst_37 : f32 to vector<2x32xf32>
    %154 = arith.addf %153, %152 : vector<2x32xf32>
    %155 = arith.divf %153, %154 : vector<2x32xf32>
    %156 = arith.mulf %147, %102 : vector<2x32xf32>
    %157 = arith.mulf %141, %149 : vector<2x32xf32>
    %158 = arith.addf %156, %157 : vector<2x32xf32>
    %159 = math.tanh %158 : vector<2x32xf32>
    %160 = arith.mulf %155, %159 : vector<2x32xf32>
    %161 = vector.extract_strided_slice %17 {offsets = [10, 0], sizes = [2, 128], strides = [1, 1]} : vector<16x128xf32> to vector<2x128xf32>
    %cst_38 = arith.constant dense<0.000000e+00> : vector<2x128xf32>
    %162 = tpu.matmul %132, %19, %cst_38 {dimension_numbers = #tpu.dot_dimension_numbers<[1], [0], [0], [1], [0, 0, 1, 1], [], []>} : vector<2x32xf32>, vector<32x128xf32>, vector<2x128xf32> -> vector<2x128xf32>
    %163 = arith.addf %161, %162 : vector<2x128xf32>
    %164 = vector.extract_strided_slice %163 {offsets = [0, 0], sizes = [2, 32], strides = [1, 1]} : vector<2x128xf32> to vector<2x32xf32>
    %165 = arith.negf %164 : vector<2x32xf32>
    %166 = math.exp %165 : vector<2x32xf32>
    %cst_39 = arith.constant 1.000000e+00 : f32
    %167 = vector.broadcast %cst_39 : f32 to vector<2x32xf32>
    %168 = arith.addf %167, %166 : vector<2x32xf32>
    %169 = arith.divf %167, %168 : vector<2x32xf32>
    %170 = vector.extract_strided_slice %163 {offsets = [0, 32], sizes = [2, 32], strides = [1, 1]} : vector<2x128xf32> to vector<2x32xf32>
    %171 = arith.negf %170 : vector<2x32xf32>
    %172 = math.exp %171 : vector<2x32xf32>
    %cst_40 = arith.constant 1.000000e+00 : f32
    %173 = vector.broadcast %cst_40 : f32 to vector<2x32xf32>
    %174 = arith.addf %173, %172 : vector<2x32xf32>
    %175 = arith.divf %173, %174 : vector<2x32xf32>
    %176 = vector.extract_strided_slice %163 {offsets = [0, 64], sizes = [2, 32], strides = [1, 1]} : vector<2x128xf32> to vector<2x32xf32>
    %177 = math.tanh %176 : vector<2x32xf32>
    %178 = vector.extract_strided_slice %163 {offsets = [0, 96], sizes = [2, 32], strides = [1, 1]} : vector<2x128xf32> to vector<2x32xf32>
    %179 = arith.negf %178 : vector<2x32xf32>
    %180 = math.exp %179 : vector<2x32xf32>
    %cst_41 = arith.constant 1.000000e+00 : f32
    %181 = vector.broadcast %cst_41 : f32 to vector<2x32xf32>
    %182 = arith.addf %181, %180 : vector<2x32xf32>
    %183 = arith.divf %181, %182 : vector<2x32xf32>
    %184 = arith.mulf %175, %130 : vector<2x32xf32>
    %185 = arith.mulf %169, %177 : vector<2x32xf32>
    %186 = arith.addf %184, %185 : vector<2x32xf32>
    %187 = math.tanh %186 : vector<2x32xf32>
    %188 = arith.mulf %183, %187 : vector<2x32xf32>
    %189 = vector.extract_strided_slice %12 {offsets = [6, 0], sizes = [2, 128], strides = [1, 1]} : vector<16x128xf32> to vector<2x128xf32>
    %cst_42 = arith.constant dense<0.000000e+00> : vector<2x128xf32>
    %190 = tpu.matmul %160, %18, %cst_42 {dimension_numbers = #tpu.dot_dimension_numbers<[1], [0], [0], [1], [0, 0, 1, 1], [], []>} : vector<2x32xf32>, vector<32x128xf32>, vector<2x128xf32> -> vector<2x128xf32>
    %191 = arith.addf %189, %190 : vector<2x128xf32>
    %192 = vector.extract_strided_slice %191 {offsets = [0, 0], sizes = [2, 32], strides = [1, 1]} : vector<2x128xf32> to vector<2x32xf32>
    %193 = arith.negf %192 : vector<2x32xf32>
    %194 = math.exp %193 : vector<2x32xf32>
    %cst_43 = arith.constant 1.000000e+00 : f32
    %195 = vector.broadcast %cst_43 : f32 to vector<2x32xf32>
    %196 = arith.addf %195, %194 : vector<2x32xf32>
    %197 = arith.divf %195, %196 : vector<2x32xf32>
    %198 = vector.extract_strided_slice %191 {offsets = [0, 32], sizes = [2, 32], strides = [1, 1]} : vector<2x128xf32> to vector<2x32xf32>
    %199 = arith.negf %198 : vector<2x32xf32>
    %200 = math.exp %199 : vector<2x32xf32>
    %cst_44 = arith.constant 1.000000e+00 : f32
    %201 = vector.broadcast %cst_44 : f32 to vector<2x32xf32>
    %202 = arith.addf %201, %200 : vector<2x32xf32>
    %203 = arith.divf %201, %202 : vector<2x32xf32>
    %204 = vector.extract_strided_slice %191 {offsets = [0, 64], sizes = [2, 32], strides = [1, 1]} : vector<2x128xf32> to vector<2x32xf32>
    %205 = math.tanh %204 : vector<2x32xf32>
    %206 = vector.extract_strided_slice %191 {offsets = [0, 96], sizes = [2, 32], strides = [1, 1]} : vector<2x128xf32> to vector<2x32xf32>
    %207 = arith.negf %206 : vector<2x32xf32>
    %208 = math.exp %207 : vector<2x32xf32>
    %cst_45 = arith.constant 1.000000e+00 : f32
    %209 = vector.broadcast %cst_45 : f32 to vector<2x32xf32>
    %210 = arith.addf %209, %208 : vector<2x32xf32>
    %211 = arith.divf %209, %210 : vector<2x32xf32>
    %212 = arith.mulf %203, %158 : vector<2x32xf32>
    %213 = arith.mulf %197, %205 : vector<2x32xf32>
    %214 = arith.addf %212, %213 : vector<2x32xf32>
    %215 = math.tanh %214 : vector<2x32xf32>
    %216 = arith.mulf %211, %215 : vector<2x32xf32>
    %217 = vector.extract_strided_slice %17 {offsets = [8, 0], sizes = [2, 128], strides = [1, 1]} : vector<16x128xf32> to vector<2x128xf32>
    %cst_46 = arith.constant dense<0.000000e+00> : vector<2x128xf32>
    %218 = tpu.matmul %188, %19, %cst_46 {dimension_numbers = #tpu.dot_dimension_numbers<[1], [0], [0], [1], [0, 0, 1, 1], [], []>} : vector<2x32xf32>, vector<32x128xf32>, vector<2x128xf32> -> vector<2x128xf32>
    %219 = arith.addf %217, %218 : vector<2x128xf32>
    %220 = vector.extract_strided_slice %219 {offsets = [0, 0], sizes = [2, 32], strides = [1, 1]} : vector<2x128xf32> to vector<2x32xf32>
    %221 = arith.negf %220 : vector<2x32xf32>
    %222 = math.exp %221 : vector<2x32xf32>
    %cst_47 = arith.constant 1.000000e+00 : f32
    %223 = vector.broadcast %cst_47 : f32 to vector<2x32xf32>
    %224 = arith.addf %223, %222 : vector<2x32xf32>
    %225 = arith.divf %223, %224 : vector<2x32xf32>
    %226 = vector.extract_strided_slice %219 {offsets = [0, 32], sizes = [2, 32], strides = [1, 1]} : vector<2x128xf32> to vector<2x32xf32>
    %227 = arith.negf %226 : vector<2x32xf32>
    %228 = math.exp %227 : vector<2x32xf32>
    %cst_48 = arith.constant 1.000000e+00 : f32
    %229 = vector.broadcast %cst_48 : f32 to vector<2x32xf32>
    %230 = arith.addf %229, %228 : vector<2x32xf32>
    %231 = arith.divf %229, %230 : vector<2x32xf32>
    %232 = vector.extract_strided_slice %219 {offsets = [0, 64], sizes = [2, 32], strides = [1, 1]} : vector<2x128xf32> to vector<2x32xf32>
    %233 = math.tanh %232 : vector<2x32xf32>
    %234 = vector.extract_strided_slice %219 {offsets = [0, 96], sizes = [2, 32], strides = [1, 1]} : vector<2x128xf32> to vector<2x32xf32>
    %235 = arith.negf %234 : vector<2x32xf32>
    %236 = math.exp %235 : vector<2x32xf32>
    %cst_49 = arith.constant 1.000000e+00 : f32
    %237 = vector.broadcast %cst_49 : f32 to vector<2x32xf32>
    %238 = arith.addf %237, %236 : vector<2x32xf32>
    %239 = arith.divf %237, %238 : vector<2x32xf32>
    %240 = arith.mulf %231, %186 : vector<2x32xf32>
    %241 = arith.mulf %225, %233 : vector<2x32xf32>
    %242 = arith.addf %240, %241 : vector<2x32xf32>
    %243 = math.tanh %242 : vector<2x32xf32>
    %244 = arith.mulf %239, %243 : vector<2x32xf32>
    %245 = vector.extract_strided_slice %12 {offsets = [8, 0], sizes = [2, 128], strides = [1, 1]} : vector<16x128xf32> to vector<2x128xf32>
    %cst_50 = arith.constant dense<0.000000e+00> : vector<2x128xf32>
    %246 = tpu.matmul %216, %18, %cst_50 {dimension_numbers = #tpu.dot_dimension_numbers<[1], [0], [0], [1], [0, 0, 1, 1], [], []>} : vector<2x32xf32>, vector<32x128xf32>, vector<2x128xf32> -> vector<2x128xf32>
    %247 = arith.addf %245, %246 : vector<2x128xf32>
    %248 = vector.extract_strided_slice %247 {offsets = [0, 0], sizes = [2, 32], strides = [1, 1]} : vector<2x128xf32> to vector<2x32xf32>
    %249 = arith.negf %248 : vector<2x32xf32>
    %250 = math.exp %249 : vector<2x32xf32>
    %cst_51 = arith.constant 1.000000e+00 : f32
    %251 = vector.broadcast %cst_51 : f32 to vector<2x32xf32>
    %252 = arith.addf %251, %250 : vector<2x32xf32>
    %253 = arith.divf %251, %252 : vector<2x32xf32>
    %254 = vector.extract_strided_slice %247 {offsets = [0, 32], sizes = [2, 32], strides = [1, 1]} : vector<2x128xf32> to vector<2x32xf32>
    %255 = arith.negf %254 : vector<2x32xf32>
    %256 = math.exp %255 : vector<2x32xf32>
    %cst_52 = arith.constant 1.000000e+00 : f32
    %257 = vector.broadcast %cst_52 : f32 to vector<2x32xf32>
    %258 = arith.addf %257, %256 : vector<2x32xf32>
    %259 = arith.divf %257, %258 : vector<2x32xf32>
    %260 = vector.extract_strided_slice %247 {offsets = [0, 64], sizes = [2, 32], strides = [1, 1]} : vector<2x128xf32> to vector<2x32xf32>
    %261 = math.tanh %260 : vector<2x32xf32>
    %262 = vector.extract_strided_slice %247 {offsets = [0, 96], sizes = [2, 32], strides = [1, 1]} : vector<2x128xf32> to vector<2x32xf32>
    %263 = arith.negf %262 : vector<2x32xf32>
    %264 = math.exp %263 : vector<2x32xf32>
    %cst_53 = arith.constant 1.000000e+00 : f32
    %265 = vector.broadcast %cst_53 : f32 to vector<2x32xf32>
    %266 = arith.addf %265, %264 : vector<2x32xf32>
    %267 = arith.divf %265, %266 : vector<2x32xf32>
    %268 = arith.mulf %259, %214 : vector<2x32xf32>
    %269 = arith.mulf %253, %261 : vector<2x32xf32>
    %270 = arith.addf %268, %269 : vector<2x32xf32>
    %271 = math.tanh %270 : vector<2x32xf32>
    %272 = arith.mulf %267, %271 : vector<2x32xf32>
    %273 = vector.extract_strided_slice %17 {offsets = [6, 0], sizes = [2, 128], strides = [1, 1]} : vector<16x128xf32> to vector<2x128xf32>
    %cst_54 = arith.constant dense<0.000000e+00> : vector<2x128xf32>
    %274 = tpu.matmul %244, %19, %cst_54 {dimension_numbers = #tpu.dot_dimension_numbers<[1], [0], [0], [1], [0, 0, 1, 1], [], []>} : vector<2x32xf32>, vector<32x128xf32>, vector<2x128xf32> -> vector<2x128xf32>
    %275 = arith.addf %273, %274 : vector<2x128xf32>
    %276 = vector.extract_strided_slice %275 {offsets = [0, 0], sizes = [2, 32], strides = [1, 1]} : vector<2x128xf32> to vector<2x32xf32>
    %277 = arith.negf %276 : vector<2x32xf32>
    %278 = math.exp %277 : vector<2x32xf32>
    %cst_55 = arith.constant 1.000000e+00 : f32
    %279 = vector.broadcast %cst_55 : f32 to vector<2x32xf32>
    %280 = arith.addf %279, %278 : vector<2x32xf32>
    %281 = arith.divf %279, %280 : vector<2x32xf32>
    %282 = vector.extract_strided_slice %275 {offsets = [0, 32], sizes = [2, 32], strides = [1, 1]} : vector<2x128xf32> to vector<2x32xf32>
    %283 = arith.negf %282 : vector<2x32xf32>
    %284 = math.exp %283 : vector<2x32xf32>
    %cst_56 = arith.constant 1.000000e+00 : f32
    %285 = vector.broadcast %cst_56 : f32 to vector<2x32xf32>
    %286 = arith.addf %285, %284 : vector<2x32xf32>
    %287 = arith.divf %285, %286 : vector<2x32xf32>
    %288 = vector.extract_strided_slice %275 {offsets = [0, 64], sizes = [2, 32], strides = [1, 1]} : vector<2x128xf32> to vector<2x32xf32>
    %289 = math.tanh %288 : vector<2x32xf32>
    %290 = vector.extract_strided_slice %275 {offsets = [0, 96], sizes = [2, 32], strides = [1, 1]} : vector<2x128xf32> to vector<2x32xf32>
    %291 = arith.negf %290 : vector<2x32xf32>
    %292 = math.exp %291 : vector<2x32xf32>
    %cst_57 = arith.constant 1.000000e+00 : f32
    %293 = vector.broadcast %cst_57 : f32 to vector<2x32xf32>
    %294 = arith.addf %293, %292 : vector<2x32xf32>
    %295 = arith.divf %293, %294 : vector<2x32xf32>
    %296 = arith.mulf %287, %242 : vector<2x32xf32>
    %297 = arith.mulf %281, %289 : vector<2x32xf32>
    %298 = arith.addf %296, %297 : vector<2x32xf32>
    %299 = math.tanh %298 : vector<2x32xf32>
    %300 = arith.mulf %295, %299 : vector<2x32xf32>
    %301 = vector.extract_strided_slice %12 {offsets = [10, 0], sizes = [2, 128], strides = [1, 1]} : vector<16x128xf32> to vector<2x128xf32>
    %cst_58 = arith.constant dense<0.000000e+00> : vector<2x128xf32>
    %302 = tpu.matmul %272, %18, %cst_58 {dimension_numbers = #tpu.dot_dimension_numbers<[1], [0], [0], [1], [0, 0, 1, 1], [], []>} : vector<2x32xf32>, vector<32x128xf32>, vector<2x128xf32> -> vector<2x128xf32>
    %303 = arith.addf %301, %302 : vector<2x128xf32>
    %304 = vector.extract_strided_slice %303 {offsets = [0, 0], sizes = [2, 32], strides = [1, 1]} : vector<2x128xf32> to vector<2x32xf32>
    %305 = arith.negf %304 : vector<2x32xf32>
    %306 = math.exp %305 : vector<2x32xf32>
    %cst_59 = arith.constant 1.000000e+00 : f32
    %307 = vector.broadcast %cst_59 : f32 to vector<2x32xf32>
    %308 = arith.addf %307, %306 : vector<2x32xf32>
    %309 = arith.divf %307, %308 : vector<2x32xf32>
    %310 = vector.extract_strided_slice %303 {offsets = [0, 32], sizes = [2, 32], strides = [1, 1]} : vector<2x128xf32> to vector<2x32xf32>
    %311 = arith.negf %310 : vector<2x32xf32>
    %312 = math.exp %311 : vector<2x32xf32>
    %cst_60 = arith.constant 1.000000e+00 : f32
    %313 = vector.broadcast %cst_60 : f32 to vector<2x32xf32>
    %314 = arith.addf %313, %312 : vector<2x32xf32>
    %315 = arith.divf %313, %314 : vector<2x32xf32>
    %316 = vector.extract_strided_slice %303 {offsets = [0, 64], sizes = [2, 32], strides = [1, 1]} : vector<2x128xf32> to vector<2x32xf32>
    %317 = math.tanh %316 : vector<2x32xf32>
    %318 = vector.extract_strided_slice %303 {offsets = [0, 96], sizes = [2, 32], strides = [1, 1]} : vector<2x128xf32> to vector<2x32xf32>
    %319 = arith.negf %318 : vector<2x32xf32>
    %320 = math.exp %319 : vector<2x32xf32>
    %cst_61 = arith.constant 1.000000e+00 : f32
    %321 = vector.broadcast %cst_61 : f32 to vector<2x32xf32>
    %322 = arith.addf %321, %320 : vector<2x32xf32>
    %323 = arith.divf %321, %322 : vector<2x32xf32>
    %324 = arith.mulf %315, %270 : vector<2x32xf32>
    %325 = arith.mulf %309, %317 : vector<2x32xf32>
    %326 = arith.addf %324, %325 : vector<2x32xf32>
    %327 = math.tanh %326 : vector<2x32xf32>
    %328 = arith.mulf %323, %327 : vector<2x32xf32>
    %329 = vector.extract_strided_slice %17 {offsets = [4, 0], sizes = [2, 128], strides = [1, 1]} : vector<16x128xf32> to vector<2x128xf32>
    %cst_62 = arith.constant dense<0.000000e+00> : vector<2x128xf32>
    %330 = tpu.matmul %300, %19, %cst_62 {dimension_numbers = #tpu.dot_dimension_numbers<[1], [0], [0], [1], [0, 0, 1, 1], [], []>} : vector<2x32xf32>, vector<32x128xf32>, vector<2x128xf32> -> vector<2x128xf32>
    %331 = arith.addf %329, %330 : vector<2x128xf32>
    %332 = vector.extract_strided_slice %331 {offsets = [0, 0], sizes = [2, 32], strides = [1, 1]} : vector<2x128xf32> to vector<2x32xf32>
    %333 = arith.negf %332 : vector<2x32xf32>
    %334 = math.exp %333 : vector<2x32xf32>
    %cst_63 = arith.constant 1.000000e+00 : f32
    %335 = vector.broadcast %cst_63 : f32 to vector<2x32xf32>
    %336 = arith.addf %335, %334 : vector<2x32xf32>
    %337 = arith.divf %335, %336 : vector<2x32xf32>
    %338 = vector.extract_strided_slice %331 {offsets = [0, 32], sizes = [2, 32], strides = [1, 1]} : vector<2x128xf32> to vector<2x32xf32>
    %339 = arith.negf %338 : vector<2x32xf32>
    %340 = math.exp %339 : vector<2x32xf32>
    %cst_64 = arith.constant 1.000000e+00 : f32
    %341 = vector.broadcast %cst_64 : f32 to vector<2x32xf32>
    %342 = arith.addf %341, %340 : vector<2x32xf32>
    %343 = arith.divf %341, %342 : vector<2x32xf32>
    %344 = vector.extract_strided_slice %331 {offsets = [0, 64], sizes = [2, 32], strides = [1, 1]} : vector<2x128xf32> to vector<2x32xf32>
    %345 = math.tanh %344 : vector<2x32xf32>
    %346 = vector.extract_strided_slice %331 {offsets = [0, 96], sizes = [2, 32], strides = [1, 1]} : vector<2x128xf32> to vector<2x32xf32>
    %347 = arith.negf %346 : vector<2x32xf32>
    %348 = math.exp %347 : vector<2x32xf32>
    %cst_65 = arith.constant 1.000000e+00 : f32
    %349 = vector.broadcast %cst_65 : f32 to vector<2x32xf32>
    %350 = arith.addf %349, %348 : vector<2x32xf32>
    %351 = arith.divf %349, %350 : vector<2x32xf32>
    %352 = arith.mulf %343, %298 : vector<2x32xf32>
    %353 = arith.mulf %337, %345 : vector<2x32xf32>
    %354 = arith.addf %352, %353 : vector<2x32xf32>
    %355 = math.tanh %354 : vector<2x32xf32>
    %356 = arith.mulf %351, %355 : vector<2x32xf32>
    %357 = vector.extract_strided_slice %12 {offsets = [12, 0], sizes = [2, 128], strides = [1, 1]} : vector<16x128xf32> to vector<2x128xf32>
    %cst_66 = arith.constant dense<0.000000e+00> : vector<2x128xf32>
    %358 = tpu.matmul %328, %18, %cst_66 {dimension_numbers = #tpu.dot_dimension_numbers<[1], [0], [0], [1], [0, 0, 1, 1], [], []>} : vector<2x32xf32>, vector<32x128xf32>, vector<2x128xf32> -> vector<2x128xf32>
    %359 = arith.addf %357, %358 : vector<2x128xf32>
    %360 = vector.extract_strided_slice %359 {offsets = [0, 0], sizes = [2, 32], strides = [1, 1]} : vector<2x128xf32> to vector<2x32xf32>
    %361 = arith.negf %360 : vector<2x32xf32>
    %362 = math.exp %361 : vector<2x32xf32>
    %cst_67 = arith.constant 1.000000e+00 : f32
    %363 = vector.broadcast %cst_67 : f32 to vector<2x32xf32>
    %364 = arith.addf %363, %362 : vector<2x32xf32>
    %365 = arith.divf %363, %364 : vector<2x32xf32>
    %366 = vector.extract_strided_slice %359 {offsets = [0, 32], sizes = [2, 32], strides = [1, 1]} : vector<2x128xf32> to vector<2x32xf32>
    %367 = arith.negf %366 : vector<2x32xf32>
    %368 = math.exp %367 : vector<2x32xf32>
    %cst_68 = arith.constant 1.000000e+00 : f32
    %369 = vector.broadcast %cst_68 : f32 to vector<2x32xf32>
    %370 = arith.addf %369, %368 : vector<2x32xf32>
    %371 = arith.divf %369, %370 : vector<2x32xf32>
    %372 = vector.extract_strided_slice %359 {offsets = [0, 64], sizes = [2, 32], strides = [1, 1]} : vector<2x128xf32> to vector<2x32xf32>
    %373 = math.tanh %372 : vector<2x32xf32>
    %374 = vector.extract_strided_slice %359 {offsets = [0, 96], sizes = [2, 32], strides = [1, 1]} : vector<2x128xf32> to vector<2x32xf32>
    %375 = arith.negf %374 : vector<2x32xf32>
    %376 = math.exp %375 : vector<2x32xf32>
    %cst_69 = arith.constant 1.000000e+00 : f32
    %377 = vector.broadcast %cst_69 : f32 to vector<2x32xf32>
    %378 = arith.addf %377, %376 : vector<2x32xf32>
    %379 = arith.divf %377, %378 : vector<2x32xf32>
    %380 = arith.mulf %371, %326 : vector<2x32xf32>
    %381 = arith.mulf %365, %373 : vector<2x32xf32>
    %382 = arith.addf %380, %381 : vector<2x32xf32>
    %383 = math.tanh %382 : vector<2x32xf32>
    %384 = arith.mulf %379, %383 : vector<2x32xf32>
    %385 = vector.extract_strided_slice %17 {offsets = [2, 0], sizes = [2, 128], strides = [1, 1]} : vector<16x128xf32> to vector<2x128xf32>
    %cst_70 = arith.constant dense<0.000000e+00> : vector<2x128xf32>
    %386 = tpu.matmul %356, %19, %cst_70 {dimension_numbers = #tpu.dot_dimension_numbers<[1], [0], [0], [1], [0, 0, 1, 1], [], []>} : vector<2x32xf32>, vector<32x128xf32>, vector<2x128xf32> -> vector<2x128xf32>
    %387 = arith.addf %385, %386 : vector<2x128xf32>
    %388 = vector.extract_strided_slice %387 {offsets = [0, 0], sizes = [2, 32], strides = [1, 1]} : vector<2x128xf32> to vector<2x32xf32>
    %389 = arith.negf %388 : vector<2x32xf32>
    %390 = math.exp %389 : vector<2x32xf32>
    %cst_71 = arith.constant 1.000000e+00 : f32
    %391 = vector.broadcast %cst_71 : f32 to vector<2x32xf32>
    %392 = arith.addf %391, %390 : vector<2x32xf32>
    %393 = arith.divf %391, %392 : vector<2x32xf32>
    %394 = vector.extract_strided_slice %387 {offsets = [0, 32], sizes = [2, 32], strides = [1, 1]} : vector<2x128xf32> to vector<2x32xf32>
    %395 = arith.negf %394 : vector<2x32xf32>
    %396 = math.exp %395 : vector<2x32xf32>
    %cst_72 = arith.constant 1.000000e+00 : f32
    %397 = vector.broadcast %cst_72 : f32 to vector<2x32xf32>
    %398 = arith.addf %397, %396 : vector<2x32xf32>
    %399 = arith.divf %397, %398 : vector<2x32xf32>
    %400 = vector.extract_strided_slice %387 {offsets = [0, 64], sizes = [2, 32], strides = [1, 1]} : vector<2x128xf32> to vector<2x32xf32>
    %401 = math.tanh %400 : vector<2x32xf32>
    %402 = vector.extract_strided_slice %387 {offsets = [0, 96], sizes = [2, 32], strides = [1, 1]} : vector<2x128xf32> to vector<2x32xf32>
    %403 = arith.negf %402 : vector<2x32xf32>
    %404 = math.exp %403 : vector<2x32xf32>
    %cst_73 = arith.constant 1.000000e+00 : f32
    %405 = vector.broadcast %cst_73 : f32 to vector<2x32xf32>
    %406 = arith.addf %405, %404 : vector<2x32xf32>
    %407 = arith.divf %405, %406 : vector<2x32xf32>
    %408 = arith.mulf %399, %354 : vector<2x32xf32>
    %409 = arith.mulf %393, %401 : vector<2x32xf32>
    %410 = arith.addf %408, %409 : vector<2x32xf32>
    %411 = math.tanh %410 : vector<2x32xf32>
    %412 = arith.mulf %407, %411 : vector<2x32xf32>
    %413 = vector.extract_strided_slice %12 {offsets = [14, 0], sizes = [2, 128], strides = [1, 1]} : vector<16x128xf32> to vector<2x128xf32>
    %cst_74 = arith.constant dense<0.000000e+00> : vector<2x128xf32>
    %414 = tpu.matmul %384, %18, %cst_74 {dimension_numbers = #tpu.dot_dimension_numbers<[1], [0], [0], [1], [0, 0, 1, 1], [], []>} : vector<2x32xf32>, vector<32x128xf32>, vector<2x128xf32> -> vector<2x128xf32>
    %415 = arith.addf %413, %414 : vector<2x128xf32>
    %416 = vector.extract_strided_slice %415 {offsets = [0, 0], sizes = [2, 32], strides = [1, 1]} : vector<2x128xf32> to vector<2x32xf32>
    %417 = arith.negf %416 : vector<2x32xf32>
    %418 = math.exp %417 : vector<2x32xf32>
    %cst_75 = arith.constant 1.000000e+00 : f32
    %419 = vector.broadcast %cst_75 : f32 to vector<2x32xf32>
    %420 = arith.addf %419, %418 : vector<2x32xf32>
    %421 = arith.divf %419, %420 : vector<2x32xf32>
    %422 = vector.extract_strided_slice %415 {offsets = [0, 32], sizes = [2, 32], strides = [1, 1]} : vector<2x128xf32> to vector<2x32xf32>
    %423 = arith.negf %422 : vector<2x32xf32>
    %424 = math.exp %423 : vector<2x32xf32>
    %cst_76 = arith.constant 1.000000e+00 : f32
    %425 = vector.broadcast %cst_76 : f32 to vector<2x32xf32>
    %426 = arith.addf %425, %424 : vector<2x32xf32>
    %427 = arith.divf %425, %426 : vector<2x32xf32>
    %428 = vector.extract_strided_slice %415 {offsets = [0, 64], sizes = [2, 32], strides = [1, 1]} : vector<2x128xf32> to vector<2x32xf32>
    %429 = math.tanh %428 : vector<2x32xf32>
    %430 = vector.extract_strided_slice %415 {offsets = [0, 96], sizes = [2, 32], strides = [1, 1]} : vector<2x128xf32> to vector<2x32xf32>
    %431 = arith.negf %430 : vector<2x32xf32>
    %432 = math.exp %431 : vector<2x32xf32>
    %cst_77 = arith.constant 1.000000e+00 : f32
    %433 = vector.broadcast %cst_77 : f32 to vector<2x32xf32>
    %434 = arith.addf %433, %432 : vector<2x32xf32>
    %435 = arith.divf %433, %434 : vector<2x32xf32>
    %436 = arith.mulf %427, %382 : vector<2x32xf32>
    %437 = arith.mulf %421, %429 : vector<2x32xf32>
    %438 = arith.addf %436, %437 : vector<2x32xf32>
    %439 = math.tanh %438 : vector<2x32xf32>
    %440 = arith.mulf %435, %439 : vector<2x32xf32>
    %441 = vector.extract_strided_slice %17 {offsets = [0, 0], sizes = [2, 128], strides = [1, 1]} : vector<16x128xf32> to vector<2x128xf32>
    %cst_78 = arith.constant dense<0.000000e+00> : vector<2x128xf32>
    %442 = tpu.matmul %412, %19, %cst_78 {dimension_numbers = #tpu.dot_dimension_numbers<[1], [0], [0], [1], [0, 0, 1, 1], [], []>} : vector<2x32xf32>, vector<32x128xf32>, vector<2x128xf32> -> vector<2x128xf32>
    %443 = arith.addf %441, %442 : vector<2x128xf32>
    %444 = vector.extract_strided_slice %443 {offsets = [0, 0], sizes = [2, 32], strides = [1, 1]} : vector<2x128xf32> to vector<2x32xf32>
    %445 = arith.negf %444 : vector<2x32xf32>
    %446 = math.exp %445 : vector<2x32xf32>
    %cst_79 = arith.constant 1.000000e+00 : f32
    %447 = vector.broadcast %cst_79 : f32 to vector<2x32xf32>
    %448 = arith.addf %447, %446 : vector<2x32xf32>
    %449 = arith.divf %447, %448 : vector<2x32xf32>
    %450 = vector.extract_strided_slice %443 {offsets = [0, 32], sizes = [2, 32], strides = [1, 1]} : vector<2x128xf32> to vector<2x32xf32>
    %451 = arith.negf %450 : vector<2x32xf32>
    %452 = math.exp %451 : vector<2x32xf32>
    %cst_80 = arith.constant 1.000000e+00 : f32
    %453 = vector.broadcast %cst_80 : f32 to vector<2x32xf32>
    %454 = arith.addf %453, %452 : vector<2x32xf32>
    %455 = arith.divf %453, %454 : vector<2x32xf32>
    %456 = vector.extract_strided_slice %443 {offsets = [0, 64], sizes = [2, 32], strides = [1, 1]} : vector<2x128xf32> to vector<2x32xf32>
    %457 = math.tanh %456 : vector<2x32xf32>
    %458 = vector.extract_strided_slice %443 {offsets = [0, 96], sizes = [2, 32], strides = [1, 1]} : vector<2x128xf32> to vector<2x32xf32>
    %459 = arith.negf %458 : vector<2x32xf32>
    %460 = math.exp %459 : vector<2x32xf32>
    %cst_81 = arith.constant 1.000000e+00 : f32
    %461 = vector.broadcast %cst_81 : f32 to vector<2x32xf32>
    %462 = arith.addf %461, %460 : vector<2x32xf32>
    %463 = arith.divf %461, %462 : vector<2x32xf32>
    %464 = arith.mulf %455, %410 : vector<2x32xf32>
    %465 = arith.mulf %449, %457 : vector<2x32xf32>
    %466 = arith.addf %464, %465 : vector<2x32xf32>
    %467 = math.tanh %466 : vector<2x32xf32>
    %468 = arith.mulf %463, %467 : vector<2x32xf32>
    %469 = tpu.concatenate %48, %104, %160, %216, %272, %328, %384, %440 in 0 : vector<2x32xf32>, vector<2x32xf32>, vector<2x32xf32>, vector<2x32xf32>, vector<2x32xf32>, vector<2x32xf32>, vector<2x32xf32>, vector<2x32xf32> -> vector<16x32xf32>
    %470 = tpu.concatenate %468, %412, %356, %300, %244, %188, %132, %76 in 0 : vector<2x32xf32>, vector<2x32xf32>, vector<2x32xf32>, vector<2x32xf32>, vector<2x32xf32>, vector<2x32xf32>, vector<2x32xf32>, vector<2x32xf32> -> vector<16x32xf32>
    %471 = tpu.concatenate %469, %470 in 1 : vector<16x32xf32>, vector<16x32xf32> -> vector<16x64xf32>
    %c0_82 = arith.constant 0 : index
    %c0_83 = arith.constant 0 : index
    %472 = vector.load %arg9[%c0_82, %c0_83] : memref<64x5xf32, #tpu.memory_space<vmem>>, vector<64x5xf32>
    %cst_84 = arith.constant dense<0.000000e+00> : vector<16x5xf32>
    %473 = tpu.matmul %471, %472, %cst_84 {dimension_numbers = #tpu.dot_dimension_numbers<[1], [0], [0], [1], [0, 0, 1, 1], [], []>} : vector<16x64xf32>, vector<64x5xf32>, vector<16x5xf32> -> vector<16x5xf32>
    %c0_85 = arith.constant 0 : index
    %c0_86 = arith.constant 0 : index
    %474 = vector.load %arg10[%c0_85, %c0_86] : memref<1x5xf32, #tpu.memory_space<vmem>>, vector<1x5xf32>
    %475 = vector.broadcast %474 : vector<1x5xf32> to vector<16x5xf32>
    %476 = arith.addf %473, %475 : vector<16x5xf32>
    %c0_87 = arith.constant 0 : index
    %c0_88 = arith.constant 0 : index
    %477 = vector.load %arg11[%c0_87, %c0_88] : memref<16x5xf32, #tpu.memory_space<vmem>>, vector<16x5xf32>
    tpu.vector_store %arg11[%c0_87, %c0_88], %476 {strides = array<i32>} : memref<16x5xf32, #tpu.memory_space<vmem>>, vector<16x5xf32>,
    %478 = tpu.iota {dimensions = array<i32: 1>} : vector<16x5xi32>
    %cst_89 = arith.constant dense<0xFF800000> : vector<16xf32>
    %479 = vector.multi_reduction <maximumf>, %476, %cst_89 [1] : vector<16x5xf32> to vector<16xf32>
    %480 = vector.shape_cast %479 : vector<16xf32> to vector<16x1xf32>
    %481 = vector.broadcast %480 : vector<16x1xf32> to vector<16x5xf32>
    %482 = arith.cmpf oeq, %476, %481 : vector<16x5xf32>
    %c5_i32 = arith.constant 5 : i32
    %483 = vector.broadcast %c5_i32 : i32 to vector<16x5xi32>
    %484 = arith.select %482, %478, %483 : vector<16x5xi1>, vector<16x5xi32>
    %cst_90 = arith.constant dense<2147483647> : vector<16xi32>
    %485 = vector.multi_reduction <minsi>, %484, %cst_90 [1] : vector<16x5xi32> to vector<16xi32>
    %486 = vector.shape_cast %485 : vector<16xi32> to vector<16x1xi32>
    %c0_91 = arith.constant 0 : index
    %c0_92 = arith.constant 0 : index
    %487 = vector.load %arg12[%c0_91, %c0_92] : memref<16x1xi32, #tpu.memory_space<vmem>>, vector<16x1xi32>
    tpu.vector_store %arg12[%c0_91, %c0_92], %486 {strides = array<i32>} : memref<16x1xi32, #tpu.memory_space<vmem>>, vector<16x1xi32>,
    %c0_93 = arith.constant 0 : index
    %c0_94 = arith.constant 0 : index
    %488 = vector.load %arg1[%c0_93, %c0_94] : memref<16x1xi32, #tpu.memory_space<vmem>>, vector<16x1xi32>
    %489 = vector.broadcast %480 : vector<16x1xf32> to vector<16x5xf32>
    %490 = arith.subf %476, %489 : vector<16x5xf32>
    %491 = math.exp %490 : vector<16x5xf32>
    %cst_95 = arith.constant dense<0.000000e+00> : vector<16xf32>
    %492 = vector.multi_reduction <add>, %491, %cst_95 [1] : vector<16x5xf32> to vector<16xf32>
    %493 = vector.shape_cast %492 : vector<16xf32> to vector<16x1xf32>
    %494 = math.log %493 : vector<16x1xf32>
    %495 = arith.addf %494, %480 : vector<16x1xf32>
    %496 = vector.broadcast %488 : vector<16x1xi32> to vector<16x5xi32>
    %497 = arith.cmpi eq, %478, %496 : vector<16x5xi32>
    %cst_96 = arith.constant 0.000000e+00 : f32
    %498 = vector.broadcast %cst_96 : f32 to vector<16x5xf32>
    %499 = arith.select %497, %476, %498 : vector<16x5xi1>, vector<16x5xf32>
    %cst_97 = arith.constant dense<0.000000e+00> : vector<16xf32>
    %500 = vector.multi_reduction <add>, %499, %cst_97 [1] : vector<16x5xf32> to vector<16xf32>
    %501 = vector.shape_cast %500 : vector<16xf32> to vector<16x1xf32>
    %502 = arith.subf %495, %501 : vector<16x1xf32>
    %503 = vector.shape_cast %502 : vector<16x1xf32> to vector<1x16x1xf32>
    %cst_98 = arith.constant dense<0.000000e+00> : vector<1xf32>
    %504 = vector.multi_reduction <add>, %503, %cst_98 [1, 2] : vector<1x16x1xf32> to vector<1xf32>
    %505 = vector.shape_cast %504 : vector<1xf32> to vector<1x1x1xf32>
    %506 = vector.extract %505[0, 0, 0] : f32 from vector<1x1x1xf32>
    %cst_99 = arith.constant 1.600000e+01 : f32
    %507 = arith.divf %506, %cst_99 : f32
    %c0_100 = arith.constant 0 : index
    %c0_101 = arith.constant 0 : index
    %508 = memref.load %arg13[%c0_100, %c0_101] : memref<1x1xf32, #tpu.memory_space<smem>>
    memref.store %507, %arg13[%c0_100, %c0_101] : memref<1x1xf32, #tpu.memory_space<smem>>
    return
  }
}

</mosaic_0001>

<llo_original>
// kernel: tpu_custom_call.1
$region0: #{tpu_custom_call.1}
  #allocation0 [shape = 'u32[]', space=smem, size = 0x4, offset = 0x4, fixed_abs, tag = 'smem constant byte address 0x4 - core index']
  #allocation1 [shape = 'u32[72,128]{1,0:T(1,128)}', space=vmem, size = 0x9000, scoped, tag = 'internal scratch']
  %s0 = inlined_call_operand.vmem [shape: s32[16,1], index: 0, kind: input, shape index: {}]
  %s1 = inlined_call_operand.vmem [shape: s32[16,1], index: 1, kind: input, shape index: {}]
  %s2 = inlined_call_operand.vmem [shape: f32[100,32], index: 2, kind: input, shape index: {}]
  %s3 = inlined_call_operand.vmem [shape: f32[32,128], index: 3, kind: input, shape index: {}]
  %s4 = inlined_call_operand.vmem [shape: f32[32,128], index: 4, kind: input, shape index: {}]
  %s5 = inlined_call_operand.vmem [shape: f32[1,128], index: 5, kind: input, shape index: {}]
  %s6 = inlined_call_operand.vmem [shape: f32[32,128], index: 6, kind: input, shape index: {}]
  %s7 = inlined_call_operand.vmem [shape: f32[32,128], index: 7, kind: input, shape index: {}]
  %s8 = inlined_call_operand.vmem [shape: f32[1,128], index: 8, kind: input, shape index: {}]
  %s9 = inlined_call_operand.vmem [shape: f32[64,5], index: 9, kind: input, shape index: {}]
  %s10 = inlined_call_operand.vmem [shape: f32[1,5], index: 10, kind: input, shape index: {}]
  %s11 = inlined_call_operand.vmem [shape: f32[16,5], index: 11, kind: output, shape index: {0}]
  %s12 = inlined_call_operand.vmem [shape: s32[16,1], index: 12, kind: output, shape index: {1}]
  %s13 = inlined_call_operand.hbm [shape: f32[1,1], index: 13, kind: output, shape index: {2}]
  %14 = xla_tuple %s11, %s12, %s13
  %s15 = sld [smem:[#allocation0]]
  $region70: #{tpu_custom_call.1} parent=0
    _
  %s17 = ssub.s32 1, %s15
  %s18 = scalar_select 0, %s17, %s15
  $region1: #{tpu_custom_call.1} parent=0
    #allocation2 [shape = 'u8[512]{0}', space=smem, size = 0x200, scoped, tag = 'output window, operand 2, single buffered']
    #allocation3 [shape = 's32[1]{0}', space=sflag, size = 0x4, scoped, tag = 'scoped memory for tpu_custom_call.1']
    %19 = vsyncpa [#allocation3], 0
    // Predicated region
    $region2: #{tpu_custom_call.1} parent=1 // pred_check
      _
    $region3: #{tpu_custom_call.1} parent=1 // pred_check_branch
      %21 = sbr.rel (0) target = $region5
    $region4: #{tpu_custom_call.1} parent=1 // pred_region
      _
    $region5: #{tpu_custom_call.1} parent=1 // pred_fallthru
      _
    // Predicated region
    $region6: #{tpu_custom_call.1} parent=1 // pred_check
      _
    $region7: #{tpu_custom_call.1} parent=1 // pred_check_branch
      %23 = sbr.rel (0) target = $region9
    $region8: #{tpu_custom_call.1} parent=1 // pred_region
      _
    $region9: #{tpu_custom_call.1} parent=1 // pred_fallthru
      _
    // Predicated region
    $region10: #{tpu_custom_call.1} parent=1 // pred_check
      _
    $region11: #{tpu_custom_call.1} parent=1 // pred_check_branch
      %25 = sbr.rel (0) target = $region13
    $region12: #{tpu_custom_call.1} parent=1 // pred_region
      _
    $region13: #{tpu_custom_call.1} parent=1 // pred_fallthru
      _
    // Predicated region
    $region14: #{tpu_custom_call.1} parent=1 // pred_check
      _
    $region15: #{tpu_custom_call.1} parent=1 // pred_check_branch
      %27 = sbr.rel (0) target = $region17
    $region16: #{tpu_custom_call.1} parent=1 // pred_region
      _
    $region17: #{tpu_custom_call.1} parent=1 // pred_fallthru
      _
    // Predicated region
    $region18: #{tpu_custom_call.1} parent=1 // pred_check
      _
    $region19: #{tpu_custom_call.1} parent=1 // pred_check_branch
      %29 = sbr.rel (0) target = $region21
    $region20: #{tpu_custom_call.1} parent=1 // pred_region
      _
    $region21: #{tpu_custom_call.1} parent=1 // pred_fallthru
      _
    // Predicated region
    $region22: #{tpu_custom_call.1} parent=1 // pred_check
      _
    $region23: #{tpu_custom_call.1} parent=1 // pred_check_branch
      %31 = sbr.rel (0) target = $region25
    $region24: #{tpu_custom_call.1} parent=1 // pred_region
      _
    $region25: #{tpu_custom_call.1} parent=1 // pred_fallthru
      _
    // Predicated region
    $region26: #{tpu_custom_call.1} parent=1 // pred_check
      _
    $region27: #{tpu_custom_call.1} parent=1 // pred_check_branch
      %33 = sbr.rel (0) target = $region29
    $region28: #{tpu_custom_call.1} parent=1 // pred_region
      _
    $region29: #{tpu_custom_call.1} parent=1 // pred_fallthru
      _
    // Predicated region
    $region30: #{tpu_custom_call.1} parent=1 // pred_check
      _
    $region31: #{tpu_custom_call.1} parent=1 // pred_check_branch
      %35 = sbr.rel (0) target = $region33
    $region32: #{tpu_custom_call.1} parent=1 // pred_region
      _
    $region33: #{tpu_custom_call.1} parent=1 // pred_fallthru
      _
    // Predicated region
    $region34: #{tpu_custom_call.1} parent=1 // pred_check
      _
    $region35: #{tpu_custom_call.1} parent=1 // pred_check_branch
      %37 = sbr.rel (0) target = $region37
    $region36: #{tpu_custom_call.1} parent=1 // pred_region
      _
    $region37: #{tpu_custom_call.1} parent=1 // pred_fallthru
      _
    // Predicated region
    $region38: #{tpu_custom_call.1} parent=1 // pred_check
      _
    $region39: #{tpu_custom_call.1} parent=1 // pred_check_branch
      %39 = sbr.rel (0) target = $region41
    $region40: #{tpu_custom_call.1} parent=1 // pred_region
      _
    $region41: #{tpu_custom_call.1} parent=1 // pred_fallthru
      _
    // Predicated region
    $region42: #{tpu_custom_call.1} parent=1 // pred_check
      _
    $region43: #{tpu_custom_call.1} parent=1 // pred_check_branch
      %41 = sbr.rel (0) target = $region45
    $region44: #{tpu_custom_call.1} parent=1 // pred_region
      _
    $region45: #{tpu_custom_call.1} parent=1 // pred_fallthru
      _
    %v42 = vld [vmem:[%s0] sm:$0xff]
    %v43 = vld [vmem:[%s0 + $0x8] sm:$0xff]
    %v44 = vlaneseq
    %v45 = vand.u32 %v44, 127
    %46 = vset.pattern.permute.xlu0 0
    %47 = vperm.xlu0 %46, %v42
    %v48 = vpop.permute.xlu0 %47
    %49 = vset.pattern.permute.xlu0 0
    %50 = vperm.xlu0 %49, %v43
    %v51 = vpop.permute.xlu0 %50
    %vm52 = vcmp.eq.s32.totalorder %v45, %v48
    %vm53 = vcmp.eq.s32.totalorder %v45, %v51
    %v54 = vsel %vm52, 1, 0
    %v55 = vsel %vm53, 1, 0
    %v56 = vcvt.s32.f32 %v54
    %v57 = vcvt.s32.f32 %v55
    %v58 = vld [vmem:[%s2] sm:$0xff]
    %v59 = vld [vmem:[%s2 + $0x8] sm:$0xff]
    %v60 = vld [vmem:[%s2 + $0x10] sm:$0xff]
    %v61 = vld [vmem:[%s2 + $0x18] sm:$0xff]
    %v62 = vld [vmem:[%s2 + $0x20] sm:$0xff]
    %v63 = vld [vmem:[%s2 + $0x28] sm:$0xff]
    %v64 = vld [vmem:[%s2 + $0x30] sm:$0xff]
    %v65 = vld [vmem:[%s2 + $0x38] sm:$0xff]
    %v66 = vld [vmem:[%s2 + $0x40] sm:$0xff]
    %v67 = vld [vmem:[%s2 + $0x48] sm:$0xff]
    %v68 = vld [vmem:[%s2 + $0x50] sm:$0xff]
    %v69 = vld [vmem:[%s2 + $0x58] sm:$0xff]
    %v70 = vld [vmem:[%s2 + $0x60] sm:$0xf]
    %vm71 = vcmask 818176
    %v73 = vsel %vm71, %v56, 0
    %v76 = vsel %vm71, %v57, 0
    %vm78 = vcmask 1043456
    %v80 = vsel %vm78, %v70, 0
    %82 = vmatpush.msra.mxu0 0.0
    %83 = vmatpush.msra.mxu0 0.0
    %84 = vmatpush.msra.mxu0 0.0
    %85 = vmatpush.msra.mxu0 %v80
    %86 = vmatpush.msra.mxu0 %v69
    %87 = vmatpush.msra.mxu0 %v68
    %88 = vmatpush.msra.mxu0 %v67
    %89 = vmatpush.msra.mxu0 %v66
    %90 = vmatpush.msra.mxu0 %v65
    %91 = vmatpush.msra.mxu0 %v64
    %92 = vmatpush.msra.mxu0 %v63
    %93 = vmatpush.msra.mxu0 %v62
    %94 = vmatpush.msra.mxu0 %v61
    %95 = vmatpush.msra.mxu0 %v60
    %96 = vmatpush.msra.mxu0 %v59
    %97 = vmatpush.msra.mxu0 %v58
    %98 = vmatmul.f32.gmra.mxu0 %v73
    %v99 = vpop.f32.mrf.mxu0
    %v100 = vadd.f32 0.0, %v99
    %101 = vmatmul.f32.gmra.mxu0 %v76
    %v102 = vpop.f32.mrf.mxu0
    %v103 = vadd.f32 0.0, %v102
    %104 = vdwg.mxu0
    %v105 = vld [vmem:[%s3] sm:$0xff]
    %v106 = vld [vmem:[%s3 + $0x8] sm:$0xff]
    %v107 = vld [vmem:[%s3 + $0x10] sm:$0xff]
    %v108 = vld [vmem:[%s3 + $0x18] sm:$0xff]
    %v109 = vld [vmem:[%s5] sm:$0x1]
    %v111 = vperm.slane %v109, 0
    %vm113 = vcmask 261120
    %v115 = vsel %vm113, %v100, 0
    %v118 = vsel %vm113, %v103, 0
    %120 = vmatpush.msra.mxu0 0.0
    %121 = vmatpush.msra.mxu0 0.0
    %122 = vmatpush.msra.mxu0 0.0
    %123 = vmatpush.msra.mxu0 0.0
    %124 = vmatpush.msra.mxu0 0.0
    %125 = vmatpush.msra.mxu0 0.0
    %126 = vmatpush.msra.mxu0 0.0
    %127 = vmatpush.msra.mxu0 0.0
    %128 = vmatpush.msra.mxu0 0.0
    %129 = vmatpush.msra.mxu0 0.0
    %130 = vmatpush.msra.mxu0 0.0
    %131 = vmatpush.msra.mxu0 0.0
    %132 = vmatpush.msra.mxu0 %v108
    %133 = vmatpush.msra.mxu0 %v107
    %134 = vmatpush.msra.mxu0 %v106
    %135 = vmatpush.msra.mxu0 %v105
    %136 = vmatmul.f32.gmra.mxu0 %v115
    %v137 = vpop.f32.mrf.mxu0
    %v138 = vadd.f32 %v111, %v137
    %139 = vmatmul.f32.gmra.mxu0 %v118
    %v140 = vpop.f32.mrf.mxu0
    %v141 = vadd.f32 %v111, %v140
    %142 = vdwg.mxu0
    %v143 = vld [vmem:[%s6] sm:$0xff]
    %v144 = vld [vmem:[%s6 + $0x8] sm:$0xff]
    %v145 = vld [vmem:[%s6 + $0x10] sm:$0xff]
    %v146 = vld [vmem:[%s6 + $0x18] sm:$0xff]
    %v147 = vld [vmem:[%s8] sm:$0x1]
    %v149 = vperm.slane %v147, 0
    %151 = vmatpush.msra.mxu0 0.0
    %152 = vmatpush.msra.mxu0 0.0
    %153 = vmatpush.msra.mxu0 0.0
    %154 = vmatpush.msra.mxu0 0.0
    %155 = vmatpush.msra.mxu0 0.0
    %156 = vmatpush.msra.mxu0 0.0
    %157 = vmatpush.msra.mxu0 0.0
    %158 = vmatpush.msra.mxu0 0.0
    %159 = vmatpush.msra.mxu0 0.0
    %160 = vmatpush.msra.mxu0 0.0
    %161 = vmatpush.msra.mxu0 0.0
    %162 = vmatpush.msra.mxu0 0.0
    %163 = vmatpush.msra.mxu0 %v146
    %164 = vmatpush.msra.mxu0 %v145
    %165 = vmatpush.msra.mxu0 %v144
    %166 = vmatpush.msra.mxu0 %v143
    %167 = vmatmul.f32.gmra.mxu0 %v115
    %v168 = vpop.f32.mrf.mxu0
    %v169 = vadd.f32 %v149, %v168
    %170 = vmatmul.f32.gmra.mxu0 %v118
    %v171 = vpop.f32.mrf.mxu0
    %v172 = vadd.f32 %v149, %v171
    %173 = vdwg.mxu0
    %v174 = vld [vmem:[%s4] sm:$0xff]
    %v175 = vld [vmem:[%s4 + $0x8] sm:$0xff]
    %v176 = vld [vmem:[%s4 + $0x10] sm:$0xff]
    %v177 = vld [vmem:[%s4 + $0x18] sm:$0xff]
    %v178 = vld [vmem:[%s7] sm:$0xff]
    %v179 = vld [vmem:[%s7 + $0x8] sm:$0xff]
    %v180 = vld [vmem:[%s7 + $0x10] sm:$0xff]
    %v181 = vld [vmem:[%s7 + $0x18] sm:$0xff]
    %v183 = vsel %vm113, 0.0, 0
    %185 = vmatpush.msra.mxu0 0.0
    %186 = vmatpush.msra.mxu0 0.0
    %187 = vmatpush.msra.mxu0 0.0
    %188 = vmatpush.msra.mxu0 0.0
    %189 = vmatpush.msra.mxu0 0.0
    %190 = vmatpush.msra.mxu0 0.0
    %191 = vmatpush.msra.mxu0 0.0
    %192 = vmatpush.msra.mxu0 0.0
    %193 = vmatpush.msra.mxu0 0.0
    %194 = vmatpush.msra.mxu0 0.0
    %195 = vmatpush.msra.mxu0 0.0
    %196 = vmatpush.msra.mxu0 0.0
    %197 = vmatpush.msra.mxu0 %v177
    %198 = vmatpush.msra.mxu0 %v176
    %199 = vmatpush.msra.mxu0 %v175
    %200 = vmatpush.msra.mxu0 %v174
    %201 = vmatmul.f32.gmra.mxu0 %v183
    %v202 = vpop.f32.mrf.mxu0
    %v203 = vadd.f32 0.0, %v202
    %204 = vdwg.mxu0
    %v205 = vadd.f32 %v138, %v203
    %v206 = vxor.u32 %v205, 2147483648
    %v207 = vmul.f32 %v206, 1.442695
    %v208 = vpow.pop %v207
    %v209 = vadd.f32 %v208, 1.0
    %v210 = vrcp.pop %v209
    %v211 = vmul.f32 %v209, %v210
    %v212 = vsub.f32 1.0, %v211
    %v213 = vmul.f32 %v210, %v212
    %v214 = vadd.f32 %v210, %v213
    %vm215 = vweird.f32 %v209
    %vm216 = vweird.f32 %v210
    %vm217 = vmor %vm215, %vm216
    %v218 = vsel %vm217, %v210, %v214
    %v219 = vand.u32 2147483647, %v209
    %vm220 = vcmp.eq.f32.partialorder %v219, 8.507059e+37
    %v221 = vand.u32 %v209, 2147483648
    %v222 = vor.u32 1.1754944e-38, %v221
    %v223 = vsel %vm220, %v222, %v218
    %v224 = vmul.f32 1.0, %v223
    %v225 = vtanh.pop %v205
    %v226 = vmul.f32 %v224, 0.0
    %228 = vrot.lane.b32.xlu0 %v225, 64
    %v229 = vpop.permute.xlu0 %228
    %v231 = vmul.f32 %v224, %v229
    %233 = vrot.lane.b32.xlu0 %v231, 32
    %v234 = vpop.permute.xlu0 %233
    %v236 = vadd.f32 %v226, %v234
    %v237 = vtanh.pop %v236
    %239 = vrot.lane.b32.xlu0 %v237, 64
    %v240 = vpop.permute.xlu0 %239
    %v242 = vmul.f32 %v224, %v240
    %243 = vmatpush.msra.mxu0 0.0
    %244 = vmatpush.msra.mxu0 0.0
    %245 = vmatpush.msra.mxu0 0.0
    %246 = vmatpush.msra.mxu0 0.0
    %247 = vmatpush.msra.mxu0 0.0
    %248 = vmatpush.msra.mxu0 0.0
    %249 = vmatpush.msra.mxu0 0.0
    %250 = vmatpush.msra.mxu0 0.0
    %251 = vmatpush.msra.mxu0 0.0
    %252 = vmatpush.msra.mxu0 0.0
    %253 = vmatpush.msra.mxu0 0.0
    %254 = vmatpush.msra.mxu0 0.0
    %255 = vmatpush.msra.mxu0 %v181
    %256 = vmatpush.msra.mxu0 %v180
    %257 = vmatpush.msra.mxu0 %v179
    %258 = vmatpush.msra.mxu0 %v178
    %259 = vmatmul.f32.gmra.mxu0 %v183
    %v260 = vpop.f32.mrf.mxu0
    %v261 = vadd.f32 0.0, %v260
    %262 = vdwg.mxu0
    %v264 = vrot.slane %v261, 2
    %v266 = vadd.f32 %v172, %v264
    %v267 = vxor.u32 %v266, 2147483648
    %v268 = vmul.f32 %v267, 1.442695
    %v269 = vpow.pop %v268
    %v270 = vadd.f32 %v269, 1.0
    %v271 = vrcp.pop %v270
    %v272 = vmul.f32 %v270, %v271
    %v273 = vsub.f32 1.0, %v272
    %v274 = vmul.f32 %v271, %v273
    %v275 = vadd.f32 %v271, %v274
    %vm276 = vweird.f32 %v270
    %vm277 = vweird.f32 %v271
    %vm278 = vmor %vm276, %vm277
    %v279 = vsel %vm278, %v271, %v275
    %v280 = vand.u32 2147483647, %v270
    %vm281 = vcmp.eq.f32.partialorder %v280, 8.507059e+37
    %v282 = vand.u32 %v270, 2147483648
    %v283 = vor.u32 1.1754944e-38, %v282
    %v284 = vsel %vm281, %v283, %v279
    %v285 = vmul.f32 1.0, %v284
    %v286 = vtanh.pop %v266
    %v287 = vmul.f32 %v285, 0.0
    %289 = vrot.lane.b32.xlu0 %v286, 64
    %v290 = vpop.permute.xlu0 %289
    %v292 = vmul.f32 %v285, %v290
    %294 = vrot.lane.b32.xlu0 %v292, 32
    %v295 = vpop.permute.xlu0 %294
    %v297 = vadd.f32 %v287, %v295
    %v298 = vtanh.pop %v297
    %300 = vrot.lane.b32.xlu0 %v298, 64
    %v301 = vpop.permute.xlu0 %300
    %v303 = vmul.f32 %v285, %v301
    %305 = vrot.lane.b32.xlu0 %v242, 32
    %v306 = vpop.permute.xlu0 %305
    %v307 = vsel %vm113, %v306, 0
    %309 = vmatpush.msra.mxu0 0.0
    %310 = vmatpush.msra.mxu0 0.0
    %311 = vmatpush.msra.mxu0 0.0
    %312 = vmatpush.msra.mxu0 0.0
    %313 = vmatpush.msra.mxu0 0.0
    %314 = vmatpush.msra.mxu0 0.0
    %315 = vmatpush.msra.mxu0 0.0
    %316 = vmatpush.msra.mxu0 0.0
    %317 = vmatpush.msra.mxu0 0.0
    %318 = vmatpush.msra.mxu0 0.0
    %319 = vmatpush.msra.mxu0 0.0
    %320 = vmatpush.msra.mxu0 0.0
    %321 = vmatpush.msra.mxu0 %v177
    %322 = vmatpush.msra.mxu0 %v176
    %323 = vmatpush.msra.mxu0 %v175
    %324 = vmatpush.msra.mxu0 %v174
    %325 = vmatmul.f32.gmra.mxu0 %v307
    %v326 = vpop.f32.mrf.mxu0
    %v327 = vadd.f32 0.0, %v326
    %328 = vdwg.mxu0
    %v330 = vrot.slane %v327, 6
    %v332 = vadd.f32 %v138, %v330
    %v333 = vxor.u32 %v332, 2147483648
    %v334 = vmul.f32 %v333, 1.442695
    %v335 = vpow.pop %v334
    %v336 = vadd.f32 %v335, 1.0
    %v337 = vrcp.pop %v336
    %v338 = vmul.f32 %v336, %v337
    %v339 = vsub.f32 1.0, %v338
    %v340 = vmul.f32 %v337, %v339
    %v341 = vadd.f32 %v337, %v340
    %vm342 = vweird.f32 %v336
    %vm343 = vweird.f32 %v337
    %vm344 = vmor %vm342, %vm343
    %v345 = vsel %vm344, %v337, %v341
    %v346 = vand.u32 2147483647, %v336
    %vm347 = vcmp.eq.f32.partialorder %v346, 8.507059e+37
    %v348 = vand.u32 %v336, 2147483648
    %v349 = vor.u32 1.1754944e-38, %v348
    %v350 = vsel %vm347, %v349, %v345
    %v351 = vmul.f32 1.0, %v350
    %v352 = vtanh.pop %v332
    %v354 = vrot.slane %v236, 6
    %v356 = vmul.f32 %v351, %v354
    %358 = vrot.lane.b32.xlu0 %v352, 64
    %v359 = vpop.permute.xlu0 %358
    %v361 = vmul.f32 %v351, %v359
    %363 = vrot.lane.b32.xlu0 %v361, 32
    %v364 = vpop.permute.xlu0 %363
    %v366 = vadd.f32 %v356, %v364
    %v367 = vtanh.pop %v366
    %369 = vrot.lane.b32.xlu0 %v367, 64
    %v370 = vpop.permute.xlu0 %369
    %v372 = vmul.f32 %v351, %v370
    %v374 = vrot.slane %v303, 6
    %375 = vrot.lane.b32.xlu0 %v374, 32
    %v376 = vpop.permute.xlu0 %375
    %v377 = vsel %vm113, %v376, 0
    %379 = vmatpush.msra.mxu0 0.0
    %380 = vmatpush.msra.mxu0 0.0
    %381 = vmatpush.msra.mxu0 0.0
    %382 = vmatpush.msra.mxu0 0.0
    %383 = vmatpush.msra.mxu0 0.0
    %384 = vmatpush.msra.mxu0 0.0
    %385 = vmatpush.msra.mxu0 0.0
    %386 = vmatpush.msra.mxu0 0.0
    %387 = vmatpush.msra.mxu0 0.0
    %388 = vmatpush.msra.mxu0 0.0
    %389 = vmatpush.msra.mxu0 0.0
    %390 = vmatpush.msra.mxu0 0.0
    %391 = vmatpush.msra.mxu0 %v181
    %392 = vmatpush.msra.mxu0 %v180
    %393 = vmatpush.msra.mxu0 %v179
    %394 = vmatpush.msra.mxu0 %v178
    %395 = vmatmul.f32.gmra.mxu0 %v377
    %v396 = vpop.f32.mrf.mxu0
    %v397 = vadd.f32 0.0, %v396
    %398 = vdwg.mxu0
    %v400 = vrot.slane %v397, 4
    %v402 = vadd.f32 %v172, %v400
    %v403 = vxor.u32 %v402, 2147483648
    %v404 = vmul.f32 %v403, 1.442695
    %v405 = vpow.pop %v404
    %v406 = vadd.f32 %v405, 1.0
    %v407 = vrcp.pop %v406
    %v408 = vmul.f32 %v406, %v407
    %v409 = vsub.f32 1.0, %v408
    %v410 = vmul.f32 %v407, %v409
    %v411 = vadd.f32 %v407, %v410
    %vm412 = vweird.f32 %v406
    %vm413 = vweird.f32 %v407
    %vm414 = vmor %vm412, %vm413
    %v415 = vsel %vm414, %v407, %v411
    %v416 = vand.u32 2147483647, %v406
    %vm417 = vcmp.eq.f32.partialorder %v416, 8.507059e+37
    %v418 = vand.u32 %v406, 2147483648
    %v419 = vor.u32 1.1754944e-38, %v418
    %v420 = vsel %vm417, %v419, %v415
    %v421 = vmul.f32 1.0, %v420
    %v422 = vtanh.pop %v402
    %v424 = vrot.slane %v297, 2
    %v426 = vmul.f32 %v421, %v424
    %428 = vrot.lane.b32.xlu0 %v422, 64
    %v429 = vpop.permute.xlu0 %428
    %v431 = vmul.f32 %v421, %v429
    %433 = vrot.lane.b32.xlu0 %v431, 32
    %v434 = vpop.permute.xlu0 %433
    %v436 = vadd.f32 %v426, %v434
    %v437 = vtanh.pop %v436
    %439 = vrot.lane.b32.xlu0 %v437, 64
    %v440 = vpop.permute.xlu0 %439
    %v442 = vmul.f32 %v421, %v440
    %v444 = vrot.slane %v372, 2
    %445 = vrot.lane.b32.xlu0 %v444, 32
    %v446 = vpop.permute.xlu0 %445
    %v447 = vsel %vm113, %v446, 0
    %449 = vmatpush.msra.mxu0 0.0
    %450 = vmatpush.msra.mxu0 0.0
    %451 = vmatpush.msra.mxu0 0.0
    %452 = vmatpush.msra.mxu0 0.0
    %453 = vmatpush.msra.mxu0 0.0
    %454 = vmatpush.msra.mxu0 0.0
    %455 = vmatpush.msra.mxu0 0.0
    %456 = vmatpush.msra.mxu0 0.0
    %457 = vmatpush.msra.mxu0 0.0
    %458 = vmatpush.msra.mxu0 0.0
    %459 = vmatpush.msra.mxu0 0.0
    %460 = vmatpush.msra.mxu0 0.0
    %461 = vmatpush.msra.mxu0 %v177
    %462 = vmatpush.msra.mxu0 %v176
    %463 = vmatpush.msra.mxu0 %v175
    %464 = vmatpush.msra.mxu0 %v174
    %465 = vmatmul.f32.gmra.mxu0 %v447
    %v466 = vpop.f32.mrf.mxu0
    %v467 = vadd.f32 0.0, %v466
    %468 = vdwg.mxu0
    %v470 = vrot.slane %v467, 4
    %v472 = vadd.f32 %v138, %v470
    %v473 = vxor.u32 %v472, 2147483648
    %v474 = vmul.f32 %v473, 1.442695
    %v475 = vpow.pop %v474
    %v476 = vadd.f32 %v475, 1.0
    %v477 = vrcp.pop %v476
    %v478 = vmul.f32 %v476, %v477
    %v479 = vsub.f32 1.0, %v478
    %v480 = vmul.f32 %v477, %v479
    %v481 = vadd.f32 %v477, %v480
    %vm482 = vweird.f32 %v476
    %vm483 = vweird.f32 %v477
    %vm484 = vmor %vm482, %vm483
    %v485 = vsel %vm484, %v477, %v481
    %v486 = vand.u32 2147483647, %v476
    %vm487 = vcmp.eq.f32.partialorder %v486, 8.507059e+37
    %v488 = vand.u32 %v476, 2147483648
    %v489 = vor.u32 1.1754944e-38, %v488
    %v490 = vsel %vm487, %v489, %v485
    %v491 = vmul.f32 1.0, %v490
    %v492 = vtanh.pop %v472
    %v494 = vrot.slane %v366, 6
    %v496 = vmul.f32 %v491, %v494
    %498 = vrot.lane.b32.xlu0 %v492, 64
    %v499 = vpop.permute.xlu0 %498
    %v501 = vmul.f32 %v491, %v499
    %503 = vrot.lane.b32.xlu0 %v501, 32
    %v504 = vpop.permute.xlu0 %503
    %v506 = vadd.f32 %v496, %v504
    %v507 = vtanh.pop %v506
    %509 = vrot.lane.b32.xlu0 %v507, 64
    %v510 = vpop.permute.xlu0 %509
    %v512 = vmul.f32 %v491, %v510
    %v514 = vrot.slane %v442, 4
    %515 = vrot.lane.b32.xlu0 %v514, 32
    %v516 = vpop.permute.xlu0 %515
    %v517 = vsel %vm113, %v516, 0
    %519 = vmatpush.msra.mxu0 0.0
    %520 = vmatpush.msra.mxu0 0.0
    %521 = vmatpush.msra.mxu0 0.0
    %522 = vmatpush.msra.mxu0 0.0
    %523 = vmatpush.msra.mxu0 0.0
    %524 = vmatpush.msra.mxu0 0.0
    %525 = vmatpush.msra.mxu0 0.0
    %526 = vmatpush.msra.mxu0 0.0
    %527 = vmatpush.msra.mxu0 0.0
    %528 = vmatpush.msra.mxu0 0.0
    %529 = vmatpush.msra.mxu0 0.0
    %530 = vmatpush.msra.mxu0 0.0
    %531 = vmatpush.msra.mxu0 %v181
    %532 = vmatpush.msra.mxu0 %v180
    %533 = vmatpush.msra.mxu0 %v179
    %534 = vmatpush.msra.mxu0 %v178
    %535 = vmatmul.f32.gmra.mxu0 %v517
    %v536 = vpop.f32.mrf.mxu0
    %v537 = vadd.f32 0.0, %v536
    %538 = vdwg.mxu0
    %v540 = vrot.slane %v537, 6
    %v542 = vadd.f32 %v172, %v540
    %v543 = vxor.u32 %v542, 2147483648
    %v544 = vmul.f32 %v543, 1.442695
    %v545 = vpow.pop %v544
    %v546 = vadd.f32 %v545, 1.0
    %v547 = vrcp.pop %v546
    %v548 = vmul.f32 %v546, %v547
    %v549 = vsub.f32 1.0, %v548
    %v550 = vmul.f32 %v547, %v549
    %v551 = vadd.f32 %v547, %v550
    %vm552 = vweird.f32 %v546
    %vm553 = vweird.f32 %v547
    %vm554 = vmor %vm552, %vm553
    %v555 = vsel %vm554, %v547, %v551
    %v556 = vand.u32 2147483647, %v546
    %vm557 = vcmp.eq.f32.partialorder %v556, 8.507059e+37
    %v558 = vand.u32 %v546, 2147483648
    %v559 = vor.u32 1.1754944e-38, %v558
    %v560 = vsel %vm557, %v559, %v555
    %v561 = vmul.f32 1.0, %v560
    %v562 = vtanh.pop %v542
    %v564 = vrot.slane %v436, 2
    %v566 = vmul.f32 %v561, %v564
    %568 = vrot.lane.b32.xlu0 %v562, 64
    %v569 = vpop.permute.xlu0 %568
    %v571 = vmul.f32 %v561, %v569
    %573 = vrot.lane.b32.xlu0 %v571, 32
    %v574 = vpop.permute.xlu0 %573
    %v576 = vadd.f32 %v566, %v574
    %v577 = vtanh.pop %v576
    %579 = vrot.lane.b32.xlu0 %v577, 64
    %v580 = vpop.permute.xlu0 %579
    %v582 = vmul.f32 %v561, %v580
    %v584 = vrot.slane %v512, 4
    %585 = vrot.lane.b32.xlu0 %v584, 32
    %v586 = vpop.permute.xlu0 %585
    %v587 = vsel %vm113, %v586, 0
    %589 = vmatpush.msra.mxu0 0.0
    %590 = vmatpush.msra.mxu0 0.0
    %591 = vmatpush.msra.mxu0 0.0
    %592 = vmatpush.msra.mxu0 0.0
    %593 = vmatpush.msra.mxu0 0.0
    %594 = vmatpush.msra.mxu0 0.0
    %595 = vmatpush.msra.mxu0 0.0
    %596 = vmatpush.msra.mxu0 0.0
    %597 = vmatpush.msra.mxu0 0.0
    %598 = vmatpush.msra.mxu0 0.0
    %599 = vmatpush.msra.mxu0 0.0
    %600 = vmatpush.msra.mxu0 0.0
    %601 = vmatpush.msra.mxu0 %v177
    %602 = vmatpush.msra.mxu0 %v176
    %603 = vmatpush.msra.mxu0 %v175
    %604 = vmatpush.msra.mxu0 %v174
    %605 = vmatmul.f32.gmra.mxu0 %v587
    %v606 = vpop.f32.mrf.mxu0
    %v607 = vadd.f32 0.0, %v606
    %608 = vdwg.mxu0
    %v610 = vrot.slane %v607, 2
    %v612 = vadd.f32 %v138, %v610
    %v613 = vxor.u32 %v612, 2147483648
    %v614 = vmul.f32 %v613, 1.442695
    %v615 = vpow.pop %v614
    %v616 = vadd.f32 %v615, 1.0
    %v617 = vrcp.pop %v616
    %v618 = vmul.f32 %v616, %v617
    %v619 = vsub.f32 1.0, %v618
    %v620 = vmul.f32 %v617, %v619
    %v621 = vadd.f32 %v617, %v620
    %vm622 = vweird.f32 %v616
    %vm623 = vweird.f32 %v617
    %vm624 = vmor %vm622, %vm623
    %v625 = vsel %vm624, %v617, %v621
    %v626 = vand.u32 2147483647, %v616
    %vm627 = vcmp.eq.f32.partialorder %v626, 8.507059e+37
    %v628 = vand.u32 %v616, 2147483648
    %v629 = vor.u32 1.1754944e-38, %v628
    %v630 = vsel %vm627, %v629, %v625
    %v631 = vmul.f32 1.0, %v630
    %v632 = vtanh.pop %v612
    %v634 = vrot.slane %v506, 6
    %v636 = vmul.f32 %v631, %v634
    %638 = vrot.lane.b32.xlu0 %v632, 64
    %v639 = vpop.permute.xlu0 %638
    %v641 = vmul.f32 %v631, %v639
    %643 = vrot.lane.b32.xlu0 %v641, 32
    %v644 = vpop.permute.xlu0 %643
    %v646 = vadd.f32 %v636, %v644
    %v647 = vtanh.pop %v646
    %649 = vrot.lane.b32.xlu0 %v647, 64
    %v650 = vpop.permute.xlu0 %649
    %v652 = vmul.f32 %v631, %v650
    %v654 = vrot.slane %v582, 2
    %655 = vrot.lane.b32.xlu0 %v654, 32
    %v656 = vpop.permute.xlu0 %655
    %v657 = vsel %vm113, %v656, 0
    %659 = vmatpush.msra.mxu0 0.0
    %660 = vmatpush.msra.mxu0 0.0
    %661 = vmatpush.msra.mxu0 0.0
    %662 = vmatpush.msra.mxu0 0.0
    %663 = vmatpush.msra.mxu0 0.0
    %664 = vmatpush.msra.mxu0 0.0
    %665 = vmatpush.msra.mxu0 0.0
    %666 = vmatpush.msra.mxu0 0.0
    %667 = vmatpush.msra.mxu0 0.0
    %668 = vmatpush.msra.mxu0 0.0
    %669 = vmatpush.msra.mxu0 0.0
    %670 = vmatpush.msra.mxu0 0.0
    %671 = vmatpush.msra.mxu0 %v181
    %672 = vmatpush.msra.mxu0 %v180
    %673 = vmatpush.msra.mxu0 %v179
    %674 = vmatpush.msra.mxu0 %v178
    %675 = vmatmul.f32.gmra.mxu0 %v657
    %v676 = vpop.f32.mrf.mxu0
    %v677 = vadd.f32 0.0, %v676
    %678 = vdwg.mxu0
    %v679 = vadd.f32 %v172, %v677
    %v680 = vxor.u32 %v679, 2147483648
    %v681 = vmul.f32 %v680, 1.442695
    %v682 = vpow.pop %v681
    %v683 = vadd.f32 %v682, 1.0
    %v684 = vrcp.pop %v683
    %v685 = vmul.f32 %v683, %v684
    %v686 = vsub.f32 1.0, %v685
    %v687 = vmul.f32 %v684, %v686
    %v688 = vadd.f32 %v684, %v687
    %vm689 = vweird.f32 %v683
    %vm690 = vweird.f32 %v684
    %vm691 = vmor %vm689, %vm690
    %v692 = vsel %vm691, %v684, %v688
    %v693 = vand.u32 2147483647, %v683
    %vm694 = vcmp.eq.f32.partialorder %v693, 8.507059e+37
    %v695 = vand.u32 %v683, 2147483648
    %v696 = vor.u32 1.1754944e-38, %v695
    %v697 = vsel %vm694, %v696, %v692
    %v698 = vmul.f32 1.0, %v697
    %v699 = vtanh.pop %v679
    %v701 = vrot.slane %v576, 2
    %v703 = vmul.f32 %v698, %v701
    %705 = vrot.lane.b32.xlu0 %v699, 64
    %v706 = vpop.permute.xlu0 %705
    %v708 = vmul.f32 %v698, %v706
    %710 = vrot.lane.b32.xlu0 %v708, 32
    %v711 = vpop.permute.xlu0 %710
    %v713 = vadd.f32 %v703, %v711
    %v714 = vtanh.pop %v713
    %716 = vrot.lane.b32.xlu0 %v714, 64
    %v717 = vpop.permute.xlu0 %716
    %v719 = vmul.f32 %v698, %v717
    %v721 = vrot.slane %v652, 6
    %722 = vrot.lane.b32.xlu0 %v721, 32
    %v723 = vpop.permute.xlu0 %722
    %v724 = vsel %vm113, %v723, 0
    %726 = vmatpush.msra.mxu0 0.0
    %727 = vmatpush.msra.mxu0 0.0
    %728 = vmatpush.msra.mxu0 0.0
    %729 = vmatpush.msra.mxu0 0.0
    %730 = vmatpush.msra.mxu0 0.0
    %731 = vmatpush.msra.mxu0 0.0
    %732 = vmatpush.msra.mxu0 0.0
    %733 = vmatpush.msra.mxu0 0.0
    %734 = vmatpush.msra.mxu0 0.0
    %735 = vmatpush.msra.mxu0 0.0
    %736 = vmatpush.msra.mxu0 0.0
    %737 = vmatpush.msra.mxu0 0.0
    %738 = vmatpush.msra.mxu0 %v177
    %739 = vmatpush.msra.mxu0 %v176
    %740 = vmatpush.msra.mxu0 %v175
    %741 = vmatpush.msra.mxu0 %v174
    %742 = vmatmul.f32.gmra.mxu0 %v724
    %v743 = vpop.f32.mrf.mxu0
    %v744 = vadd.f32 0.0, %v743
    %745 = vdwg.mxu0
    %v746 = vadd.f32 %v141, %v744
    %v747 = vxor.u32 %v746, 2147483648
    %v748 = vmul.f32 %v747, 1.442695
    %v749 = vpow.pop %v748
    %v750 = vadd.f32 %v749, 1.0
    %v751 = vrcp.pop %v750
    %v752 = vmul.f32 %v750, %v751
    %v753 = vsub.f32 1.0, %v752
    %v754 = vmul.f32 %v751, %v753
    %v755 = vadd.f32 %v751, %v754
    %vm756 = vweird.f32 %v750
    %vm757 = vweird.f32 %v751
    %vm758 = vmor %vm756, %vm757
    %v759 = vsel %vm758, %v751, %v755
    %v760 = vand.u32 2147483647, %v750
    %vm761 = vcmp.eq.f32.partialorder %v760, 8.507059e+37
    %v762 = vand.u32 %v750, 2147483648
    %v763 = vor.u32 1.1754944e-38, %v762
    %v764 = vsel %vm761, %v763, %v759
    %v765 = vmul.f32 1.0, %v764
    %v766 = vtanh.pop %v746
    %v768 = vrot.slane %v646, 6
    %v770 = vmul.f32 %v765, %v768
    %772 = vrot.lane.b32.xlu0 %v766, 64
    %v773 = vpop.permute.xlu0 %772
    %v775 = vmul.f32 %v765, %v773
    %777 = vrot.lane.b32.xlu0 %v775, 32
    %v778 = vpop.permute.xlu0 %777
    %v780 = vadd.f32 %v770, %v778
    %v781 = vtanh.pop %v780
    %783 = vrot.lane.b32.xlu0 %v781, 64
    %v784 = vpop.permute.xlu0 %783
    %v786 = vmul.f32 %v765, %v784
    %788 = vrot.lane.b32.xlu0 %v719, 32
    %v789 = vpop.permute.xlu0 %788
    %v790 = vsel %vm113, %v789, 0
    %792 = vmatpush.msra.mxu0 0.0
    %793 = vmatpush.msra.mxu0 0.0
    %794 = vmatpush.msra.mxu0 0.0
    %795 = vmatpush.msra.mxu0 0.0
    %796 = vmatpush.msra.mxu0 0.0
    %797 = vmatpush.msra.mxu0 0.0
    %798 = vmatpush.msra.mxu0 0.0
    %799 = vmatpush.msra.mxu0 0.0
    %800 = vmatpush.msra.mxu0 0.0
    %801 = vmatpush.msra.mxu0 0.0
    %802 = vmatpush.msra.mxu0 0.0
    %803 = vmatpush.msra.mxu0 0.0
    %804 = vmatpush.msra.mxu0 %v181
    %805 = vmatpush.msra.mxu0 %v180
    %806 = vmatpush.msra.mxu0 %v179
    %807 = vmatpush.msra.mxu0 %v178
    %808 = vmatmul.f32.gmra.mxu0 %v790
    %v809 = vpop.f32.mrf.mxu0
    %v810 = vadd.f32 0.0, %v809
    %811 = vdwg.mxu0
    %v813 = vrot.slane %v810, 2
    %v815 = vadd.f32 %v169, %v813
    %v816 = vxor.u32 %v815, 2147483648
    %v817 = vmul.f32 %v816, 1.442695
    %v818 = vpow.pop %v817
    %v819 = vadd.f32 %v818, 1.0
    %v820 = vrcp.pop %v819
    %v821 = vmul.f32 %v819, %v820
    %v822 = vsub.f32 1.0, %v821
    %v823 = vmul.f32 %v820, %v822
    %v824 = vadd.f32 %v820, %v823
    %vm825 = vweird.f32 %v819
    %vm826 = vweird.f32 %v820
    %vm827 = vmor %vm825, %vm826
    %v828 = vsel %vm827, %v820, %v824
    %v829 = vand.u32 2147483647, %v819
    %vm830 = vcmp.eq.f32.partialorder %v829, 8.507059e+37
    %v831 = vand.u32 %v819, 2147483648
    %v832 = vor.u32 1.1754944e-38, %v831
    %v833 = vsel %vm830, %v832, %v828
    %v834 = vmul.f32 1.0, %v833
    %v835 = vtanh.pop %v815
    %v837 = vrot.slane %v713, 2
    %v839 = vmul.f32 %v834, %v837
    %841 = vrot.lane.b32.xlu0 %v835, 64
    %v842 = vpop.permute.xlu0 %841
    %v844 = vmul.f32 %v834, %v842
    %846 = vrot.lane.b32.xlu0 %v844, 32
    %v847 = vpop.permute.xlu0 %846
    %v849 = vadd.f32 %v839, %v847
    %v850 = vtanh.pop %v849
    %852 = vrot.lane.b32.xlu0 %v850, 64
    %v853 = vpop.permute.xlu0 %852
    %v855 = vmul.f32 %v834, %v853
    %857 = vrot.lane.b32.xlu0 %v786, 32
    %v858 = vpop.permute.xlu0 %857
    %v859 = vsel %vm113, %v858, 0
    %861 = vmatpush.msra.mxu0 0.0
    %862 = vmatpush.msra.mxu0 0.0
    %863 = vmatpush.msra.mxu0 0.0
    %864 = vmatpush.msra.mxu0 0.0
    %865 = vmatpush.msra.mxu0 0.0
    %866 = vmatpush.msra.mxu0 0.0
    %867 = vmatpush.msra.mxu0 0.0
    %868 = vmatpush.msra.mxu0 0.0
    %869 = vmatpush.msra.mxu0 0.0
    %870 = vmatpush.msra.mxu0 0.0
    %871 = vmatpush.msra.mxu0 0.0
    %872 = vmatpush.msra.mxu0 0.0
    %873 = vmatpush.msra.mxu0 %v177
    %874 = vmatpush.msra.mxu0 %v176
    %875 = vmatpush.msra.mxu0 %v175
    %876 = vmatpush.msra.mxu0 %v174
    %877 = vmatmul.f32.gmra.mxu0 %v859
    %v878 = vpop.f32.mrf.mxu0
    %v879 = vadd.f32 0.0, %v878
    %880 = vdwg.mxu0
    %v882 = vrot.slane %v879, 6
    %v884 = vadd.f32 %v141, %v882
    %v885 = vxor.u32 %v884, 2147483648
    %v886 = vmul.f32 %v885, 1.442695
    %v887 = vpow.pop %v886
    %v888 = vadd.f32 %v887, 1.0
    %v889 = vrcp.pop %v888
    %v890 = vmul.f32 %v888, %v889
    %v891 = vsub.f32 1.0, %v890
    %v892 = vmul.f32 %v889, %v891
    %v893 = vadd.f32 %v889, %v892
    %vm894 = vweird.f32 %v888
    %vm895 = vweird.f32 %v889
    %vm896 = vmor %vm894, %vm895
    %v897 = vsel %vm896, %v889, %v893
    %v898 = vand.u32 2147483647, %v888
    %vm899 = vcmp.eq.f32.partialorder %v898, 8.507059e+37
    %v900 = vand.u32 %v888, 2147483648
    %v901 = vor.u32 1.1754944e-38, %v900
    %v902 = vsel %vm899, %v901, %v897
    %v903 = vmul.f32 1.0, %v902
    %v904 = vtanh.pop %v884
    %v906 = vrot.slane %v780, 6
    %v908 = vmul.f32 %v903, %v906
    %910 = vrot.lane.b32.xlu0 %v904, 64
    %v911 = vpop.permute.xlu0 %910
    %v913 = vmul.f32 %v903, %v911
    %915 = vrot.lane.b32.xlu0 %v913, 32
    %v916 = vpop.permute.xlu0 %915
    %v918 = vadd.f32 %v908, %v916
    %v919 = vtanh.pop %v918
    %921 = vrot.lane.b32.xlu0 %v919, 64
    %v922 = vpop.permute.xlu0 %921
    %v924 = vmul.f32 %v903, %v922
    %v926 = vrot.slane %v855, 6
    %927 = vrot.lane.b32.xlu0 %v926, 32
    %v928 = vpop.permute.xlu0 %927
    %v929 = vsel %vm113, %v928, 0
    %931 = vmatpush.msra.mxu0 0.0
    %932 = vmatpush.msra.mxu0 0.0
    %933 = vmatpush.msra.mxu0 0.0
    %934 = vmatpush.msra.mxu0 0.0
    %935 = vmatpush.msra.mxu0 0.0
    %936 = vmatpush.msra.mxu0 0.0
    %937 = vmatpush.msra.mxu0 0.0
    %938 = vmatpush.msra.mxu0 0.0
    %939 = vmatpush.msra.mxu0 0.0
    %940 = vmatpush.msra.mxu0 0.0
    %941 = vmatpush.msra.mxu0 0.0
    %942 = vmatpush.msra.mxu0 0.0
    %943 = vmatpush.msra.mxu0 %v181
    %944 = vmatpush.msra.mxu0 %v180
    %945 = vmatpush.msra.mxu0 %v179
    %946 = vmatpush.msra.mxu0 %v178
    %947 = vmatmul.f32.gmra.mxu0 %v929
    %v948 = vpop.f32.mrf.mxu0
    %v949 = vadd.f32 0.0, %v948
    %950 = vdwg.mxu0
    %v952 = vrot.slane %v949, 4
    %v954 = vadd.f32 %v169, %v952
    %v955 = vxor.u32 %v954, 2147483648
    %v956 = vmul.f32 %v955, 1.442695
    %v957 = vpow.pop %v956
    %v958 = vadd.f32 %v957, 1.0
    %v959 = vrcp.pop %v958
    %v960 = vmul.f32 %v958, %v959
    %v961 = vsub.f32 1.0, %v960
    %v962 = vmul.f32 %v959, %v961
    %v963 = vadd.f32 %v959, %v962
    %vm964 = vweird.f32 %v958
    %vm965 = vweird.f32 %v959
    %vm966 = vmor %vm964, %vm965
    %v967 = vsel %vm966, %v959, %v963
    %v968 = vand.u32 2147483647, %v958
    %vm969 = vcmp.eq.f32.partialorder %v968, 8.507059e+37
    %v970 = vand.u32 %v958, 2147483648
    %v971 = vor.u32 1.1754944e-38, %v970
    %v972 = vsel %vm969, %v971, %v967
    %v973 = vmul.f32 1.0, %v972
    %v974 = vtanh.pop %v954
    %v976 = vrot.slane %v849, 2
    %v978 = vmul.f32 %v973, %v976
    %980 = vrot.lane.b32.xlu0 %v974, 64
    %v981 = vpop.permute.xlu0 %980
    %v983 = vmul.f32 %v973, %v981
    %985 = vrot.lane.b32.xlu0 %v983, 32
    %v986 = vpop.permute.xlu0 %985
    %v988 = vadd.f32 %v978, %v986
    %v989 = vtanh.pop %v988
    %991 = vrot.lane.b32.xlu0 %v989, 64
    %v992 = vpop.permute.xlu0 %991
    %v994 = vmul.f32 %v973, %v992
    %v996 = vrot.slane %v924, 2
    %997 = vrot.lane.b32.xlu0 %v996, 32
    %v998 = vpop.permute.xlu0 %997
    %v999 = vsel %vm113, %v998, 0
    %1001 = vmatpush.msra.mxu0 0.0
    %1002 = vmatpush.msra.mxu0 0.0
    %1003 = vmatpush.msra.mxu0 0.0
    %1004 = vmatpush.msra.mxu0 0.0
    %1005 = vmatpush.msra.mxu0 0.0
    %1006 = vmatpush.msra.mxu0 0.0
    %1007 = vmatpush.msra.mxu0 0.0
    %1008 = vmatpush.msra.mxu0 0.0
    %1009 = vmatpush.msra.mxu0 0.0
    %1010 = vmatpush.msra.mxu0 0.0
    %1011 = vmatpush.msra.mxu0 0.0
    %1012 = vmatpush.msra.mxu0 0.0
    %1013 = vmatpush.msra.mxu0 %v177
    %1014 = vmatpush.msra.mxu0 %v176
    %1015 = vmatpush.msra.mxu0 %v175
    %1016 = vmatpush.msra.mxu0 %v174
    %1017 = vmatmul.f32.gmra.mxu0 %v999
    %v1018 = vpop.f32.mrf.mxu0
    %v1019 = vadd.f32 0.0, %v1018
    %1020 = vdwg.mxu0
    %v1022 = vrot.slane %v1019, 4
    %v1024 = vadd.f32 %v141, %v1022
    %v1025 = vxor.u32 %v1024, 2147483648
    %v1026 = vmul.f32 %v1025, 1.442695
    %v1027 = vpow.pop %v1026
    %v1028 = vadd.f32 %v1027, 1.0
    %v1029 = vrcp.pop %v1028
    %v1030 = vmul.f32 %v1028, %v1029
    %v1031 = vsub.f32 1.0, %v1030
    %v1032 = vmul.f32 %v1029, %v1031
    %v1033 = vadd.f32 %v1029, %v1032
    %vm1034 = vweird.f32 %v1028
    %vm1035 = vweird.f32 %v1029
    %vm1036 = vmor %vm1034, %vm1035
    %v1037 = vsel %vm1036, %v1029, %v1033
    %v1038 = vand.u32 2147483647, %v1028
    %vm1039 = vcmp.eq.f32.partialorder %v1038, 8.507059e+37
    %v1040 = vand.u32 %v1028, 2147483648
    %v1041 = vor.u32 1.1754944e-38, %v1040
    %v1042 = vsel %vm1039, %v1041, %v1037
    %v1043 = vmul.f32 1.0, %v1042
    %v1044 = vtanh.pop %v1024
    %v1046 = vrot.slane %v918, 6
    %v1048 = vmul.f32 %v1043, %v1046
    %1050 = vrot.lane.b32.xlu0 %v1044, 64
    %v1051 = vpop.permute.xlu0 %1050
    %v1053 = vmul.f32 %v1043, %v1051
    %1055 = vrot.lane.b32.xlu0 %v1053, 32
    %v1056 = vpop.permute.xlu0 %1055
    %v1058 = vadd.f32 %v1048, %v1056
    %v1059 = vtanh.pop %v1058
    %1061 = vrot.lane.b32.xlu0 %v1059, 64
    %v1062 = vpop.permute.xlu0 %1061
    %v1064 = vmul.f32 %v1043, %v1062
    %v1066 = vrot.slane %v994, 4
    %1067 = vrot.lane.b32.xlu0 %v1066, 32
    %v1068 = vpop.permute.xlu0 %1067
    %v1069 = vsel %vm113, %v1068, 0
    %1071 = vmatpush.msra.mxu0 0.0
    %1072 = vmatpush.msra.mxu0 0.0
    %1073 = vmatpush.msra.mxu0 0.0
    %1074 = vmatpush.msra.mxu0 0.0
    %1075 = vmatpush.msra.mxu0 0.0
    %1076 = vmatpush.msra.mxu0 0.0
    %1077 = vmatpush.msra.mxu0 0.0
    %1078 = vmatpush.msra.mxu0 0.0
    %1079 = vmatpush.msra.mxu0 0.0
    %1080 = vmatpush.msra.mxu0 0.0
    %1081 = vmatpush.msra.mxu0 0.0
    %1082 = vmatpush.msra.mxu0 0.0
    %1083 = vmatpush.msra.mxu0 %v181
    %1084 = vmatpush.msra.mxu0 %v180
    %1085 = vmatpush.msra.mxu0 %v179
    %1086 = vmatpush.msra.mxu0 %v178
    %1087 = vmatmul.f32.gmra.mxu0 %v1069
    %v1088 = vpop.f32.mrf.mxu0
    %v1089 = vadd.f32 0.0, %v1088
    %1090 = vdwg.mxu0
    %v1092 = vrot.slane %v1089, 6
    %v1094 = vadd.f32 %v169, %v1092
    %v1095 = vxor.u32 %v1094, 2147483648
    %v1096 = vmul.f32 %v1095, 1.442695
    %v1097 = vpow.pop %v1096
    %v1098 = vadd.f32 %v1097, 1.0
    %v1099 = vrcp.pop %v1098
    %v1100 = vmul.f32 %v1098, %v1099
    %v1101 = vsub.f32 1.0, %v1100
    %v1102 = vmul.f32 %v1099, %v1101
    %v1103 = vadd.f32 %v1099, %v1102
    %vm1104 = vweird.f32 %v1098
    %vm1105 = vweird.f32 %v1099
    %vm1106 = vmor %vm1104, %vm1105
    %v1107 = vsel %vm1106, %v1099, %v1103
    %v1108 = vand.u32 2147483647, %v1098
    %vm1109 = vcmp.eq.f32.partialorder %v1108, 8.507059e+37
    %v1110 = vand.u32 %v1098, 2147483648
    %v1111 = vor.u32 1.1754944e-38, %v1110
    %v1112 = vsel %vm1109, %v1111, %v1107
    %v1113 = vmul.f32 1.0, %v1112
    %v1114 = vtanh.pop %v1094
    %v1116 = vrot.slane %v988, 2
    %v1118 = vmul.f32 %v1113, %v1116
    %1120 = vrot.lane.b32.xlu0 %v1114, 64
    %v1121 = vpop.permute.xlu0 %1120
    %v1123 = vmul.f32 %v1113, %v1121
    %1125 = vrot.lane.b32.xlu0 %v1123, 32
    %v1126 = vpop.permute.xlu0 %1125
    %v1128 = vadd.f32 %v1118, %v1126
    %v1129 = vtanh.pop %v1128
    %1131 = vrot.lane.b32.xlu0 %v1129, 64
    %v1132 = vpop.permute.xlu0 %1131
    %v1134 = vmul.f32 %v1113, %v1132
    %v1136 = vrot.slane %v1064, 4
    %1137 = vrot.lane.b32.xlu0 %v1136, 32
    %v1138 = vpop.permute.xlu0 %1137
    %v1139 = vsel %vm113, %v1138, 0
    %1141 = vmatpush.msra.mxu0 0.0
    %1142 = vmatpush.msra.mxu0 0.0
    %1143 = vmatpush.msra.mxu0 0.0
    %1144 = vmatpush.msra.mxu0 0.0
    %1145 = vmatpush.msra.mxu0 0.0
    %1146 = vmatpush.msra.mxu0 0.0
    %1147 = vmatpush.msra.mxu0 0.0
    %1148 = vmatpush.msra.mxu0 0.0
    %1149 = vmatpush.msra.mxu0 0.0
    %1150 = vmatpush.msra.mxu0 0.0
    %1151 = vmatpush.msra.mxu0 0.0
    %1152 = vmatpush.msra.mxu0 0.0
    %1153 = vmatpush.msra.mxu0 %v177
    %1154 = vmatpush.msra.mxu0 %v176
    %1155 = vmatpush.msra.mxu0 %v175
    %1156 = vmatpush.msra.mxu0 %v174
    %1157 = vmatmul.f32.gmra.mxu0 %v1139
    %v1158 = vpop.f32.mrf.mxu0
    %v1159 = vadd.f32 0.0, %v1158
    %1160 = vdwg.mxu0
    %v1162 = vrot.slane %v1159, 2
    %v1164 = vadd.f32 %v141, %v1162
    %v1165 = vxor.u32 %v1164, 2147483648
    %v1166 = vmul.f32 %v1165, 1.442695
    %v1167 = vpow.pop %v1166
    %v1168 = vadd.f32 %v1167, 1.0
    %v1169 = vrcp.pop %v1168
    %v1170 = vmul.f32 %v1168, %v1169
    %v1171 = vsub.f32 1.0, %v1170
    %v1172 = vmul.f32 %v1169, %v1171
    %v1173 = vadd.f32 %v1169, %v1172
    %vm1174 = vweird.f32 %v1168
    %vm1175 = vweird.f32 %v1169
    %vm1176 = vmor %vm1174, %vm1175
    %v1177 = vsel %vm1176, %v1169, %v1173
    %v1178 = vand.u32 2147483647, %v1168
    %vm1179 = vcmp.eq.f32.partialorder %v1178, 8.507059e+37
    %v1180 = vand.u32 %v1168, 2147483648
    %v1181 = vor.u32 1.1754944e-38, %v1180
    %v1182 = vsel %vm1179, %v1181, %v1177
    %v1183 = vmul.f32 1.0, %v1182
    %v1184 = vtanh.pop %v1164
    %v1186 = vrot.slane %v1058, 6
    %v1188 = vmul.f32 %v1183, %v1186
    %1190 = vrot.lane.b32.xlu0 %v1184, 64
    %v1191 = vpop.permute.xlu0 %1190
    %v1193 = vmul.f32 %v1183, %v1191
    %1195 = vrot.lane.b32.xlu0 %v1193, 32
    %v1196 = vpop.permute.xlu0 %1195
    %v1198 = vadd.f32 %v1188, %v1196
    %v1199 = vtanh.pop %v1198
    %1201 = vrot.lane.b32.xlu0 %v1199, 64
    %v1202 = vpop.permute.xlu0 %1201
    %v1204 = vmul.f32 %v1183, %v1202
    %v1206 = vrot.slane %v1134, 2
    %1207 = vrot.lane.b32.xlu0 %v1206, 32
    %v1208 = vpop.permute.xlu0 %1207
    %v1209 = vsel %vm113, %v1208, 0
    %1211 = vmatpush.msra.mxu0 0.0
    %1212 = vmatpush.msra.mxu0 0.0
    %1213 = vmatpush.msra.mxu0 0.0
    %1214 = vmatpush.msra.mxu0 0.0
    %1215 = vmatpush.msra.mxu0 0.0
    %1216 = vmatpush.msra.mxu0 0.0
    %1217 = vmatpush.msra.mxu0 0.0
    %1218 = vmatpush.msra.mxu0 0.0
    %1219 = vmatpush.msra.mxu0 0.0
    %1220 = vmatpush.msra.mxu0 0.0
    %1221 = vmatpush.msra.mxu0 0.0
    %1222 = vmatpush.msra.mxu0 0.0
    %1223 = vmatpush.msra.mxu0 %v181
    %1224 = vmatpush.msra.mxu0 %v180
    %1225 = vmatpush.msra.mxu0 %v179
    %1226 = vmatpush.msra.mxu0 %v178
    %1227 = vmatmul.f32.gmra.mxu0 %v1209
    %v1228 = vpop.f32.mrf.mxu0
    %v1229 = vadd.f32 0.0, %v1228
    %1230 = vdwg.mxu0
    %v1231 = vadd.f32 %v169, %v1229
    %v1232 = vxor.u32 %v1231, 2147483648
    %v1233 = vmul.f32 %v1232, 1.442695
    %v1234 = vpow.pop %v1233
    %v1235 = vadd.f32 %v1234, 1.0
    %v1236 = vrcp.pop %v1235
    %v1237 = vmul.f32 %v1235, %v1236
    %v1238 = vsub.f32 1.0, %v1237
    %v1239 = vmul.f32 %v1236, %v1238
    %v1240 = vadd.f32 %v1236, %v1239
    %vm1241 = vweird.f32 %v1235
    %vm1242 = vweird.f32 %v1236
    %vm1243 = vmor %vm1241, %vm1242
    %v1244 = vsel %vm1243, %v1236, %v1240
    %v1245 = vand.u32 2147483647, %v1235
    %vm1246 = vcmp.eq.f32.partialorder %v1245, 8.507059e+37
    %v1247 = vand.u32 %v1235, 2147483648
    %v1248 = vor.u32 1.1754944e-38, %v1247
    %v1249 = vsel %vm1246, %v1248, %v1244
    %v1250 = vmul.f32 1.0, %v1249
    %v1251 = vtanh.pop %v1231
    %v1253 = vrot.slane %v1128, 2
    %v1255 = vmul.f32 %v1250, %v1253
    %1257 = vrot.lane.b32.xlu0 %v1251, 64
    %v1258 = vpop.permute.xlu0 %1257
    %v1260 = vmul.f32 %v1250, %v1258
    %1262 = vrot.lane.b32.xlu0 %v1260, 32
    %v1263 = vpop.permute.xlu0 %1262
    %v1265 = vadd.f32 %v1255, %v1263
    %v1266 = vtanh.pop %v1265
    %1268 = vrot.lane.b32.xlu0 %v1266, 64
    %v1269 = vpop.permute.xlu0 %1268
    %v1271 = vmul.f32 %v1250, %v1269
    %vm1272 = vcmask 1041408
    %v1273 = vsel %vm1272, %v242, %v372
    %v1274 = vsel %vm78, %v1273, %v512
    %vm1275 = vcmask 1045504
    %v1276 = vsel %vm1275, %v1274, %v652
    %v1277 = vsel %vm1272, %v786, %v924
    %v1278 = vsel %vm78, %v1277, %v1064
    %v1279 = vsel %vm1275, %v1278, %v1204
    %v1280 = vsel %vm1272, %v1271, %v1134
    %v1281 = vsel %vm78, %v1280, %v994
    %v1282 = vsel %vm1275, %v1281, %v855
    %v1283 = vsel %vm1272, %v719, %v582
    %v1284 = vsel %vm78, %v1283, %v442
    %v1285 = vsel %vm1275, %v1284, %v303
    %1288 = vrot.lane.b32.xlu0 %v1276, 32
    %v1289 = vpop.permute.xlu0 %1288
    %1290 = vrot.lane.b32.xlu0 %v1279, 32
    %v1291 = vpop.permute.xlu0 %1290
    %1296 = vrot.lane.b32.xlu0 %v1282, 64
    %v1297 = vpop.permute.xlu0 %1296
    %1298 = vrot.lane.b32.xlu0 %v1285, 64
    %v1299 = vpop.permute.xlu0 %1298
    %v1302 = vsel %vm113, %v1289, %v1297
    %v1303 = vsel %vm113, %v1291, %v1299
    %v1304 = vld [vmem:[%s9] sm:$0xff]
    %v1305 = vld [vmem:[%s9 + $0x8] sm:$0xff]
    %v1306 = vld [vmem:[%s9 + $0x10] sm:$0xff]
    %v1307 = vld [vmem:[%s9 + $0x18] sm:$0xff]
    %v1308 = vld [vmem:[%s9 + $0x20] sm:$0xff]
    %v1309 = vld [vmem:[%s9 + $0x28] sm:$0xff]
    %v1310 = vld [vmem:[%s9 + $0x30] sm:$0xff]
    %v1311 = vld [vmem:[%s9 + $0x38] sm:$0xff]
    %v1312 = vld [vmem:[%s10] sm:$0x1]
    %v1314 = vperm.slane %v1312, 0
    %vm1316 = vcmask 523264
    %v1318 = vsel %vm1316, %v1302, 0
    %v1321 = vsel %vm1316, %v1303, 0
    %1323 = vmatpush.msra.mxu0 0.0
    %1324 = vmatpush.msra.mxu0 0.0
    %1325 = vmatpush.msra.mxu0 0.0
    %1326 = vmatpush.msra.mxu0 0.0
    %1327 = vmatpush.msra.mxu0 0.0
    %1328 = vmatpush.msra.mxu0 0.0
    %1329 = vmatpush.msra.mxu0 0.0
    %1330 = vmatpush.msra.mxu0 0.0
    %1331 = vmatpush.msra.mxu0 %v1311
    %1332 = vmatpush.msra.mxu0 %v1310
    %1333 = vmatpush.msra.mxu0 %v1309
    %1334 = vmatpush.msra.mxu0 %v1308
    %1335 = vmatpush.msra.mxu0 %v1307
    %1336 = vmatpush.msra.mxu0 %v1306
    %1337 = vmatpush.msra.mxu0 %v1305
    %1338 = vmatpush.msra.mxu0 %v1304
    %1339 = vmatmul.f32.gmra.mxu0 %v1318
    %v1340 = vpop.f32.mrf.mxu0
    %v1341 = vadd.f32 %v1314, %v1340
    %1342 = vmatmul.f32.gmra.mxu0 %v1321
    %v1343 = vpop.f32.mrf.mxu0
    %v1344 = vadd.f32 %v1314, %v1343
    %1345 = vdwg.mxu0
    %vm1346 = vcmask 39936
    %1347 = vst.msk [vmem:[%s11] sm:$0xff] %vm1346, %v1341
    %1348 = vst.msk [vmem:[%s11 + $0x8] sm:$0xff] %vm1346, %v1344
    %v1349 = vsel %vm1346, %v1341, -inf
    %1350 = vmax.xlane.f32.xlu0 %v1349
    %v1351 = vpop.xlane.xlu0 %1350
    %v1352 = vsel %vm1346, %v1344, -inf
    %1353 = vmax.xlane.f32.xlu0 %v1352
    %v1354 = vpop.xlane.xlu0 %1353
    %vm1355 = vcmp.eq.f32.partialorder %v1341, %v1351
    %vm1356 = vcmp.eq.f32.partialorder %v1344, %v1354
    %v1357 = vsel %vm1355, %v45, 5
    %v1358 = vsel %vm1356, %v45, 5
    %v1359 = vsel %vm1346, %v1357, 2147483647
    %v1360 = vand.u32 %v1359, 65535
    %v1361 = vshra.s32 %v1359, 16
    %v1362 = vcvt.s32.f32 %v1360
    %v1363 = vcvt.s32.f32 %v1361
    %1364 = vmin.xlane.f32.xlu0 %v1363
    %v1365 = vpop.xlane.xlu0 %1364
    %vm1366 = vcmp.eq.f32.partialorder %v1363, %v1365
    %v1367 = vsel %vm1366, %v1362, inf
    %1368 = vmin.xlane.f32.xlu0 %v1367
    %v1369 = vpop.xlane.xlu0 %1368
    %v1370 = vcvt.f32.s32 %v1369
    %v1371 = vcvt.f32.s32 %v1365
    %v1372 = vshll.u32 %v1371, 16
    %v1373 = vadd.s32 %v1372, %v1370
    %v1374 = vsel %vm1346, %v1358, 2147483647
    %v1375 = vand.u32 %v1374, 65535
    %v1376 = vshra.s32 %v1374, 16
    %v1377 = vcvt.s32.f32 %v1375
    %v1378 = vcvt.s32.f32 %v1376
    %1379 = vmin.xlane.f32.xlu0 %v1378
    %v1380 = vpop.xlane.xlu0 %1379
    %vm1381 = vcmp.eq.f32.partialorder %v1378, %v1380
    %v1382 = vsel %vm1381, %v1377, inf
    %1383 = vmin.xlane.f32.xlu0 %v1382
    %v1384 = vpop.xlane.xlu0 %1383
    %v1385 = vcvt.f32.s32 %v1384
    %v1386 = vcvt.f32.s32 %v1380
    %v1387 = vshll.u32 %v1386, 16
    %v1388 = vadd.s32 %v1387, %v1385
    %vm1389 = vcmask 7168
    %1390 = vst.msk [vmem:[%s12] sm:$0xff] %vm1389, %v1373
    %1391 = vst.msk [vmem:[%s12 + $0x8] sm:$0xff] %vm1389, %v1388
    %v1392 = vld [vmem:[%s1] sm:$0xff]
    %v1393 = vld [vmem:[%s1 + $0x8] sm:$0xff]
    %v1394 = vsub.f32 %v1341, %v1351
    %v1395 = vsub.f32 %v1344, %v1354
    %v1396 = vmul.f32 %v1394, 1.442695
    %v1397 = vpow.pop %v1396
    %v1398 = vmul.f32 %v1395, 1.442695
    %v1399 = vpow.pop %v1398
    %v1400 = vsel %vm1346, %v1397, 0.0
    %1401 = vadd.xlane.f32.xlu0 %v1400
    %v1402 = vpop.xlane.xlu0 %1401
    %v1403 = vsel %vm1346, %v1399, 0.0
    %1404 = vadd.xlane.f32.xlu0 %v1403
    %v1405 = vpop.xlane.xlu0 %1404
    %v1406 = vlog2.pop %v1402
    %v1407 = vmul.f32 %v1406, 0.6931472
    %v1408 = vlog2.pop %v1405
    %v1409 = vmul.f32 %v1408, 0.6931472
    %v1410 = vadd.f32 %v1407, %v1351
    %v1411 = vadd.f32 %v1409, %v1354
    %1412 = vset.pattern.permute.xlu0 0
    %1413 = vperm.xlu0 %1412, %v1392
    %v1414 = vpop.permute.xlu0 %1413
    %1415 = vset.pattern.permute.xlu0 0
    %1416 = vperm.xlu0 %1415, %v1393
    %v1417 = vpop.permute.xlu0 %1416
    %vm1418 = vcmp.eq.s32.totalorder %v45, %v1414
    %vm1419 = vcmp.eq.s32.totalorder %v45, %v1417
    %v1420 = vsel %vm1418, %v1341, 0.0
    %v1421 = vsel %vm1419, %v1344, 0.0
    %v1422 = vsel %vm1346, %v1420, 0.0
    %1423 = vadd.xlane.f32.xlu0 %v1422
    %v1424 = vpop.xlane.xlu0 %1423
    %v1425 = vsel %vm1346, %v1421, 0.0
    %1426 = vadd.xlane.f32.xlu0 %v1425
    %v1427 = vpop.xlane.xlu0 %1426
    %v1428 = vsub.f32 %v1410, %v1424
    %v1429 = vsub.f32 %v1411, %v1427
    %v1430 = vsel %vm1389, %v1428, 0.0
    %v1431 = vsel %vm1389, %v1429, 0.0
    %v1432 = vadd.f32 %v1430, %v1431
    %1433 = vadd.xlane.f32.xlu0 %v1432
    %v1434 = vpop.xlane.xlu0 %1433
    %v1435 = vrot.slane %v1434, 4
    %v1436 = vadd.f32 %v1434, %v1435
    %v1437 = vrot.slane %v1436, 2
    %v1438 = vadd.f32 %v1436, %v1437
    %v1439 = vrot.slane %v1438, 1
    %v1440 = vadd.f32 %v1438, %v1439
    %s1441 = vtos %v1440
    %v1442 = vrcp.pop 16.0
    %v1443 = vmul.f32 16.0, %v1442
    %v1444 = vsub.f32 1.0, %v1443
    %v1445 = vmul.f32 %v1442, %v1444
    %v1446 = vadd.f32 %v1442, %v1445
    %vm1447 = vweird.f32 %v1442
    %v1448 = vsel %vm1447, %v1442, %v1446
    %s1449 = vtos %v1448
    %s1450 = smul.f32 %s1441, %s1449
    %s1451 = scalar_lea.smem [#allocation2], 0
    %1452 = sst [smem:[%s1451]] %s1450
    // Predicated region
    $region46: #{tpu_custom_call.1} parent=1 // pred_check
      _
    $region47: #{tpu_custom_call.1} parent=1 // pred_check_branch
      %1454 = sbr.rel (0) target = $region49
    $region48: #{tpu_custom_call.1} parent=1 // pred_region
      _
    $region49: #{tpu_custom_call.1} parent=1 // pred_fallthru
      _
    // Predicated region
    $region50: #{tpu_custom_call.1} parent=1 // pred_check
      _
    $region51: #{tpu_custom_call.1} parent=1 // pred_check_branch
      %1456 = sbr.rel (0) target = $region53
    $region52: #{tpu_custom_call.1} parent=1 // pred_region
      _
    $region53: #{tpu_custom_call.1} parent=1 // pred_fallthru
      _
    // Predicated region
    $region54: #{tpu_custom_call.1} parent=1 // pred_check
      _
    $region55: #{tpu_custom_call.1} parent=1 // pred_check_branch
      %1458 = sbr.rel (0) target = $region57
    $region56: #{tpu_custom_call.1} parent=1 // pred_region
      %1460 = vsyncadd [#allocation3], 0
      %s1462 = sshll.u32 %s13, 4
      %s1463 = int_to_ptr.hbm [resolvable:$true] %s1462
      %1465 = dma.smem_to_hbm [#allocation2], 16, %s1463, [#allocation3]
    $region57: #{tpu_custom_call.1} parent=1 // pred_fallthru
      _
    // Predicated region
    $region58: #{tpu_custom_call.1} parent=1 // pred_check
      _
    $region59: #{tpu_custom_call.1} parent=1 // pred_check_branch
      %1467 = sbr.rel (0) target = $region61
    $region60: #{tpu_custom_call.1} parent=1 // pred_region
      _
    $region61: #{tpu_custom_call.1} parent=1 // pred_fallthru
      _
    // Predicated region
    $region62: #{tpu_custom_call.1} parent=1 // pred_check
      _
    $region63: #{tpu_custom_call.1} parent=1 // pred_check_branch
      %1469 = sbr.rel (0) target = $region65
    $region64: #{tpu_custom_call.1} parent=1 // pred_region
      _
    $region65: #{tpu_custom_call.1} parent=1 // pred_fallthru
      _
    // Predicated region
    $region66: #{tpu_custom_call.1} parent=1 // pred_check
      _
    $region67: #{tpu_custom_call.1} parent=1 // pred_check_branch
      %1471 = sbr.rel (0) target = $region69
    $region68: #{tpu_custom_call.1} parent=1 // pred_region
      %1473 = dma.done [#allocation3], 16
    $region69: #{tpu_custom_call.1} parent=1 // pred_fallthru
      _
    %1474 = sfence
    %1475 = vsyncpa [#allocation3], 1

</llo_original>
